<compile_context>
chip_gen: v7x
topology: tpu7x:2x2x1
jax: 0.10.0
libtpu: 0.0.40
codegen_flags: <defaults>
</compile_context>

<pallas_src>
import functools
import math

import jax
import jax.numpy as jnp
from jax.experimental import pallas as pl
from jax.experimental.pallas import tpu as pltpu

BN_EPS = 1e-5

# Padded per-sample row counts inside the kernel (real conv lengths are 49 / 24 / 11).
P1, P2, P3 = 64, 32, 16
L1_VALID, L2_VALID, L3_VALID = 49, 24, 11


# ---------------------------------------------------------------------------
# The fused Pallas kernel: packed conv chain + MaxPool1d(11) + MLP head.
# ---------------------------------------------------------------------------

def all_conv_kernel(x_ref, w1_ref, b1_ref, w2_ref, b2_ref, w3_ref, b3_ref,
                    wf1_ref, bf1_ref, wf2_ref, bf2_ref, o_ref,
                    s1_ref, s2_ref, s3_ref, t1_ref, t2_ref, t3_ref):
    """One batch tile (TB samples) of the fused AllConv forward.

    BatchNorm1d is folded in eval mode (fixed running statistics) into the conv
    weights, so each conv layer is GEMM + bias + ReLU.
    """
    tb = o_ref.shape[2]
    n1, n2, n3 = P1 * tb, P2 * tb, P3 * tb

    def bias_relu(acc, b_ref):
        return jnp.maximum(acc + b_ref[...], 0.0)

    # --- Conv layer 1: host-side im2col, so this is one (n1, 3*Cin) @ (3*Cin, C1) GEMM.
    h1 = bias_relu(jnp.dot(x_ref[...], w1_ref[...],
                           preferred_element_type=jnp.float32), b1_ref)      # (n1, c1)
    s1_ref[pl.ds(0, n1), :] = h1
    s1_ref[pl.ds(n1, 8), :] = jnp.zeros((8, s1_ref.shape[1]), jnp.float32)   # pad rows

    # --- Conv layer 2: stride-2 tap gather (sublane-strided loads) + one im2col GEMM.
    g2 = jnp.concatenate(
        [s1_ref[pl.ds(t, n2, stride=2), :] for t in range(3)], axis=1)       # (n2, 3*c1)
    h2 = bias_relu(jnp.dot(g2, w2_ref[...],
                           preferred_element_type=jnp.float32), b2_ref)      # (n2, c2)
    s2_ref[pl.ds(0, n2), :] = h2
    s2_ref[pl.ds(n2, 8), :] = jnp.zeros((8, s2_ref.shape[1]), jnp.float32)

    # --- Conv layer 3.
    g3 = jnp.concatenate(
        [s2_ref[pl.ds(t, n3, stride=2), :] for t in range(3)], axis=1)       # (n3, 3*c2)
    h3 = bias_relu(jnp.dot(g3, w3_ref[...],
                           preferred_element_type=jnp.float32), b3_ref)      # (n3, c3)

    # --- MaxPool1d(11) + squeeze: padded per-sample rows (local pos >= 11) are forced
    # to 0 (neutral, post-ReLU values are >= 0), then a binary max tree of stride-2
    # loads reduces the 16 per-sample rows to one row per sample.
    pos = jax.lax.broadcasted_iota(jnp.int32, (n3, 1), 0) % P3
    s3_ref[...] = jnp.where(pos < L3_VALID, h3, 0.0)
    t1_ref[...] = jnp.maximum(s3_ref[pl.ds(0, 8 * tb, stride=2), :],
                              s3_ref[pl.ds(1, 8 * tb, stride=2), :])
    t2_ref[...] = jnp.maximum(t1_ref[pl.ds(0, 4 * tb, stride=2), :],
                              t1_ref[pl.ds(1, 4 * tb, stride=2), :])
    t3_ref[...] = jnp.maximum(t2_ref[pl.ds(0, 2 * tb, stride=2), :],
                              t2_ref[pl.ds(1, 2 * tb, stride=2), :])
    pooled = jnp.maximum(t3_ref[pl.ds(0, tb, stride=2), :],
                         t3_ref[pl.ds(1, tb, stride=2), :])                  # (tb, c3)

    # --- FC head: Linear -> ReLU -> Linear, stored as one lane-dense (1, tb) row.
    hid = jnp.maximum(
        jnp.dot(pooled, wf1_ref[...], preferred_element_type=jnp.float32) + bf1_ref[...],
        0.0)                                                                  # (tb, 30)
    out_row = jnp.dot(wf2_ref[...], hid.T,
                      preferred_element_type=jnp.float32) + bf2_ref[...]      # (1, tb)
    o_ref[0] = out_row


def fused_all_conv(x, flat_params, *, tb_max=128, vmem_limit_bytes=40 * 1024 * 1024):
    """x: (B, L, C_total) packed channel-last input; flat_params: 10 packed arrays."""
    B, L, C = x.shape
    l1 = (L - 3) // 2 + 1
    l2 = (l1 - 3) // 2 + 1
    l3 = (l2 - 3) // 2 + 1
    assert (l1, l2, l3) == (L1_VALID, L2_VALID, L3_VALID), (
        "AllConv expects length 100 (100 -> 49 -> 24 -> 11 -> MaxPool1d(11))")

    w1, b1, w2, b2, w3, b3, wf1, bf1, wf2, bf2 = flat_params
    c1, c2, c3 = w1.shape[1], w2.shape[1], w3.shape[1]

    # Host-side im2col for the first stride-2 conv: rows = (sample, out position),
    # lanes = 3 taps x packed input channels.  Pad to P1 rows per sample so every later
    # stride-2 gather keeps the same per-sample alignment.
    xim = jnp.concatenate([x[:, t:t + 2 * (l1 - 1) + 1:2, :] for t in range(3)], axis=-1)
    xim = jnp.pad(xim, ((0, 0), (0, P1 - l1), (0, 0)))                 # (B, P1, 3*C)

    tb = min(tb_max, B)                      # batch tile; for very large B grid >= 2
    b_pad = ((B + tb - 1) // tb) * tb        # so both v7x TensorCores get work
    if b_pad != B:
        xim = jnp.pad(xim, ((0, b_pad - B), (0, 0), (0, 0)))
    nblk = b_pad // tb
    x2d = xim.reshape(b_pad * P1, 3 * C)

    in_specs = [pl.BlockSpec((tb * P1, 3 * C), lambda b: (b, 0))]
    for p in flat_params:
        in_specs.append(pl.BlockSpec(p.shape, lambda b, nd=p.ndim: (0,) * nd))

    out = pl.pallas_call(
        all_conv_kernel,
        out_shape=jax.ShapeDtypeStruct((nblk, 1, tb), jnp.float32),
        grid=(nblk,),
        in_specs=in_specs,
        out_specs=pl.BlockSpec((1, 1, tb), lambda b: (b, 0, 0)),
        scratch_shapes=[
            pltpu.VMEM((tb * P1 + 8, c1), jnp.float32),   # conv1 activations (+pad rows)
            pltpu.VMEM((tb * P2 + 8, c2), jnp.float32),   # conv2 activations (+pad rows)
            pltpu.VMEM((tb * P3, c3), jnp.float32),       # conv3 activations (masked)
            pltpu.VMEM((tb * 8, c3), jnp.float32),        # max-pool tree levels
            pltpu.VMEM((tb * 4, c3), jnp.float32),
            pltpu.VMEM((tb * 2, c3), jnp.float32),
        ],
        compiler_params=pltpu.CompilerParams(
            dimension_semantics=("parallel",),
            vmem_limit_bytes=vmem_limit_bytes),
    )(x2d, *flat_params)
    return out.reshape(b_pad)[:B]


# ---------------------------------------------------------------------------
# Parameter setup: torch-like init, BN folding, block-diagonal branch packing.
# ---------------------------------------------------------------------------

def make_conv_params(key, cin, cout, k=3):
    kw, kb = jax.random.split(key)
    bound = 1.0 / math.sqrt(cin * k)
    w = jax.random.uniform(kw, (cout, cin, k), minval=-bound, maxval=bound,
                           dtype=jnp.float32)                    # torch layout (Co,Ci,K)
    b = jax.random.uniform(kb, (cout,), minval=-bound, maxval=bound, dtype=jnp.float32)
    return w, b


def make_bn_params(key, c):
    k1, k2, k3, k4 = jax.random.split(key, 4)
    g = 1.0 + 0.1 * jax.random.normal(k1, (c,), dtype=jnp.float32)
    beta = 0.1 * jax.random.normal(k2, (c,), dtype=jnp.float32)
    mu = 0.1 * jax.random.normal(k3, (c,), dtype=jnp.float32)
    var = 1.0 + 0.1 * jax.random.uniform(k4, (c,), dtype=jnp.float32)
    return g, beta, mu, var


def fold_conv_bn(w, b, g, beta, mu, var):
    """Fold eval-mode BatchNorm1d + conv bias into the conv taps.
    w: (Cout, Cin, K) torch layout -> wf: (K, Cin, Cout), bf: (Cout,)."""
    scale = g / jnp.sqrt(var + BN_EPS)
    wf = jnp.transpose(w, (2, 1, 0)) * scale
    bf = (b - mu) * scale + beta
    return wf, bf


def init_branch(key, cin):
    chans = [cin, 10, 20, 30]
    layers = []
    for i, k in enumerate(jax.random.split(key, 3)):
        kw, kb = jax.random.split(k)
        w, b = make_conv_params(kw, chans[i], chans[i + 1])
        layers.append(fold_conv_bn(w, b, *make_bn_params(kb, chans[i + 1])))
    return layers


def pack_layer(ws, bs):
    """ws: per-branch folded taps (K=3, cin_i, cout_i) -> im2col weight
    (3*sum cin, sum cout): rows ordered [tap0 | tap1 | tap2], block-diagonal branches."""
    k = ws[0].shape[0]
    cin_tot = sum(w.shape[1] for w in ws)
    cout_tot = sum(w.shape[2] for w in ws)
    W = jnp.zeros((k * cin_tot, cout_tot), jnp.float32)
    for t in range(k):
        ri = ci = 0
        for w in ws:
            W = W.at[t * cin_tot + ri: t * cin_tot + ri + w.shape[1],
                     ci: ci + w.shape[2]].set(w[t])
            ri += w.shape[1]
            ci += w.shape[2]
    b = jnp.concatenate(bs).reshape(1, -1)
    return W, b


def pack_branches(branches):
    flat = []
    for layer_idx in range(3):
        ws = [br[layer_idx][0] for br in branches]
        bs = [br[layer_idx][1] for br in branches]
        W, b = pack_layer(ws, bs)
        flat += [W, b]
    return flat


def make_linear(key, fin, fout):
    k1, k2 = jax.random.split(key)
    bound = 1.0 / math.sqrt(fin)
    w = jax.random.uniform(k1, (fin, fout), minval=-bound, maxval=bound, dtype=jnp.float32)
    b = jax.random.uniform(k2, (1, fout), minval=-bound, maxval=bound, dtype=jnp.float32)
    return w, b


def make_fc_head(key_a, key_b, fin):
    w1, b1 = make_linear(key_a, fin, 30)
    w2, b2 = make_linear(key_b, 30, 1)
    # Final Linear stored as a (1, 30) row so the kernel emits a lane-dense (1, TB) output.
    return [w1, b1, w2.T, b2]


def init_all_conv_params(key):
    k_a, k_n, k_s, k_f1a, k_f1b, k_f2a, k_f2b = jax.random.split(key, 7)
    accel = init_branch(k_a, 3)
    alpha = init_branch(k_n, 4)
    special = init_branch(k_s, 6)
    return {
        "packed3": tuple(pack_branches([accel, alpha, special])
                         + make_fc_head(k_f1a, k_f1b, 90)),      # use_special=True
        "packed2": tuple(pack_branches([accel, alpha])
                         + make_fc_head(k_f2a, k_f2b, 60)),      # use_special=False
    }


# ---------------------------------------------------------------------------
# Forward (matches AllConv.forward; timestamp/users accepted but unused, as in torch).
# ---------------------------------------------------------------------------

def all_conv_forward(params, accel, alphanum, special, timestamp, users, use_special=True):
    del timestamp, users   # unused, exactly as in the reference forward

    def to_lc(a):          # (B, C, L) -> (B, L, C): channels on the lane axis
        return jnp.transpose(a, (0, 2, 1)).astype(jnp.float32)

    if use_special:
        x = jnp.concatenate([to_lc(accel), to_lc(alphanum), to_lc(special)], axis=-1)
        flat = params["packed3"]
    else:
        x = jnp.concatenate([to_lc(accel), to_lc(alphanum)], axis=-1)
        flat = params["packed2"]
    return fused_all_conv(x, flat)                 # (B,) == .view([-1])


if __name__ == "__main__":
    key = jax.random.PRNGKey(0)
    ks = jax.random.split(key, 6)
    B, L = 2, 100   # conv lengths: 100 -> 49 -> 24 -> 11 -> MaxPool1d(11) -> 1 (squeezed)
    accel = jax.random.normal(ks[0], (B, 3, L), dtype=jnp.float32)
    alphanum = jax.random.normal(ks[1], (B, 4, L), dtype=jnp.float32)
    special = jax.random.normal(ks[2], (B, 6, L), dtype=jnp.float32)
    timestamp = jax.random.normal(ks[3], (B,), dtype=jnp.float32)   # unused by forward
    users = jnp.arange(B, dtype=jnp.int32)                          # unused by forward

    params = init_all_conv_params(ks[4])
    fwd = jax.jit(functools.partial(all_conv_forward, use_special=True))
    out = jax.block_until_ready(fwd(params, accel, alphanum, special, timestamp, users))
    assert out.shape == (B,) and out.dtype == jnp.float32
    print("KERNEL_OK")
</pallas_src>

<mosaic_0001>
module attributes {stable_mosaic.version = 11 : i64} {
  func.func @all_conv_kernel(%arg0: i32, %arg1: memref<128x39xf32, #tpu.memory_space<vmem>>, %arg2: memref<39x30xf32, #tpu.memory_space<vmem>>, %arg3: memref<1x30xf32, #tpu.memory_space<vmem>>, %arg4: memref<90x60xf32, #tpu.memory_space<vmem>>, %arg5: memref<1x60xf32, #tpu.memory_space<vmem>>, %arg6: memref<180x90xf32, #tpu.memory_space<vmem>>, %arg7: memref<1x90xf32, #tpu.memory_space<vmem>>, %arg8: memref<90x30xf32, #tpu.memory_space<vmem>>, %arg9: memref<1x30xf32, #tpu.memory_space<vmem>>, %arg10: memref<1x30xf32, #tpu.memory_space<vmem>>, %arg11: memref<1x1xf32, #tpu.memory_space<vmem>>, %arg12: memref<1x1x2xf32, #tpu.memory_space<vmem>>, %arg13: memref<136x30xf32, #tpu.memory_space<vmem>>, %arg14: memref<72x60xf32, #tpu.memory_space<vmem>>, %arg15: memref<32x90xf32, #tpu.memory_space<vmem>>, %arg16: memref<16x90xf32, #tpu.memory_space<vmem>>, %arg17: memref<8x90xf32, #tpu.memory_space<vmem>>, %arg18: memref<4x90xf32, #tpu.memory_space<vmem>>) attributes {dimension_semantics = [#tpu.dimension_semantics<parallel>], iteration_bounds = array<i64: 1>, scalar_prefetch = 0 : i64, scratch_operands = 6 : i64, tpu.core_type = #tpu.core_type<tc>, window_params = [{transform_indices = @transform_0, window_bounds = array<i64: 128, 39>}, {pipeline_mode = #tpu.pipeline_mode<synchronous>, transform_indices = @transform_1, window_bounds = array<i64: 39, 30>}, {pipeline_mode = #tpu.pipeline_mode<synchronous>, transform_indices = @transform_2, window_bounds = array<i64: 1, 30>}, {pipeline_mode = #tpu.pipeline_mode<synchronous>, transform_indices = @transform_3, window_bounds = array<i64: 90, 60>}, {pipeline_mode = #tpu.pipeline_mode<synchronous>, transform_indices = @transform_4, window_bounds = array<i64: 1, 60>}, {pipeline_mode = #tpu.pipeline_mode<synchronous>, transform_indices = @transform_5, window_bounds = array<i64: 180, 90>}, {pipeline_mode = #tpu.pipeline_mode<synchronous>, transform_indices = @transform_6, window_bounds = array<i64: 1, 90>}, {pipeline_mode = #tpu.pipeline_mode<synchronous>, transform_indices = @transform_7, window_bounds = array<i64: 90, 30>}, {pipeline_mode = #tpu.pipeline_mode<synchronous>, transform_indices = @transform_8, window_bounds = array<i64: 1, 30>}, {pipeline_mode = #tpu.pipeline_mode<synchronous>, transform_indices = @transform_9, window_bounds = array<i64: 1, 30>}, {pipeline_mode = #tpu.pipeline_mode<synchronous>, transform_indices = @transform_10, window_bounds = array<i64: 1, 1>}, {transform_indices = @transform_11, window_bounds = array<i64: 1, 1, 2>}]} {
    %c0 = arith.constant 0 : index
    %c0_0 = arith.constant 0 : index
    %0 = vector.load %arg1[%c0, %c0_0] : memref<128x39xf32, #tpu.memory_space<vmem>>, vector<128x39xf32>
    %c0_1 = arith.constant 0 : index
    %c0_2 = arith.constant 0 : index
    %1 = vector.load %arg2[%c0_1, %c0_2] : memref<39x30xf32, #tpu.memory_space<vmem>>, vector<39x30xf32>
    %cst = arith.constant dense<0.000000e+00> : vector<128x30xf32>
    %2 = tpu.matmul %0, %1, %cst {dimension_numbers = #tpu.dot_dimension_numbers<[1], [0], [0], [1], [0, 0, 1, 1], [], []>} : vector<128x39xf32>, vector<39x30xf32>, vector<128x30xf32> -> vector<128x30xf32>
    %c0_3 = arith.constant 0 : index
    %c0_4 = arith.constant 0 : index
    %3 = vector.load %arg3[%c0_3, %c0_4] : memref<1x30xf32, #tpu.memory_space<vmem>>, vector<1x30xf32>
    %4 = vector.broadcast %3 : vector<1x30xf32> to vector<128x30xf32>
    %5 = arith.addf %2, %4 : vector<128x30xf32>
    %cst_5 = arith.constant 0.000000e+00 : f32
    %6 = vector.broadcast %cst_5 : f32 to vector<128x30xf32>
    %7 = arith.maximumf %5, %6 : vector<128x30xf32>
    %c0_6 = arith.constant 0 : index
    %c0_7 = arith.constant 0 : index
    %8 = vector.load %arg13[%c0_6, %c0_7] : memref<136x30xf32, #tpu.memory_space<vmem>>, vector<128x30xf32>
    tpu.vector_store %arg13[%c0_6, %c0_7], %7 {strides = array<i32>} : memref<136x30xf32, #tpu.memory_space<vmem>>, vector<128x30xf32>,
    %cst_8 = arith.constant 0.000000e+00 : f32
    %9 = vector.broadcast %cst_8 : f32 to vector<8x30xf32>
    %c128 = arith.constant 128 : index
    %c0_9 = arith.constant 0 : index
    %10 = vector.load %arg13[%c128, %c0_9] : memref<136x30xf32, #tpu.memory_space<vmem>>, vector<8x30xf32>
    tpu.vector_store %arg13[%c128, %c0_9], %9 {strides = array<i32>} : memref<136x30xf32, #tpu.memory_space<vmem>>, vector<8x30xf32>,
    %c0_10 = arith.constant 0 : index
    %c0_11 = arith.constant 0 : index
    %11 = tpu.strided_load %arg13[%c0_10, %c0_11] {strides = array<i32: 2, 1>} : memref<136x30xf32, #tpu.memory_space<vmem>>, vector<64x30xf32>
    %c1 = arith.constant 1 : index
    %c0_12 = arith.constant 0 : index
    %12 = tpu.strided_load %arg13[%c1, %c0_12] {strides = array<i32: 2, 1>} : memref<136x30xf32, #tpu.memory_space<vmem>>, vector<64x30xf32>
    %c2 = arith.constant 2 : index
    %c0_13 = arith.constant 0 : index
    %13 = tpu.strided_load %arg13[%c2, %c0_13] {strides = array<i32: 2, 1>} : memref<136x30xf32, #tpu.memory_space<vmem>>, vector<64x30xf32>
    %14 = tpu.concatenate %11, %12, %13 in 1 : vector<64x30xf32>, vector<64x30xf32>, vector<64x30xf32> -> vector<64x90xf32>
    %c0_14 = arith.constant 0 : index
    %c0_15 = arith.constant 0 : index
    %15 = vector.load %arg4[%c0_14, %c0_15] : memref<90x60xf32, #tpu.memory_space<vmem>>, vector<90x60xf32>
    %cst_16 = arith.constant dense<0.000000e+00> : vector<64x60xf32>
    %16 = tpu.matmul %14, %15, %cst_16 {dimension_numbers = #tpu.dot_dimension_numbers<[1], [0], [0], [1], [0, 0, 1, 1], [], []>} : vector<64x90xf32>, vector<90x60xf32>, vector<64x60xf32> -> vector<64x60xf32>
    %c0_17 = arith.constant 0 : index
    %c0_18 = arith.constant 0 : index
    %17 = vector.load %arg5[%c0_17, %c0_18] : memref<1x60xf32, #tpu.memory_space<vmem>>, vector<1x60xf32>
    %18 = vector.broadcast %17 : vector<1x60xf32> to vector<64x60xf32>
    %19 = arith.addf %16, %18 : vector<64x60xf32>
    %cst_19 = arith.constant 0.000000e+00 : f32
    %20 = vector.broadcast %cst_19 : f32 to vector<64x60xf32>
    %21 = arith.maximumf %19, %20 : vector<64x60xf32>
    %c0_20 = arith.constant 0 : index
    %c0_21 = arith.constant 0 : index
    %22 = vector.load %arg14[%c0_20, %c0_21] : memref<72x60xf32, #tpu.memory_space<vmem>>, vector<64x60xf32>
    tpu.vector_store %arg14[%c0_20, %c0_21], %21 {strides = array<i32>} : memref<72x60xf32, #tpu.memory_space<vmem>>, vector<64x60xf32>,
    %cst_22 = arith.constant 0.000000e+00 : f32
    %23 = vector.broadcast %cst_22 : f32 to vector<8x60xf32>
    %c64 = arith.constant 64 : index
    %c0_23 = arith.constant 0 : index
    %24 = vector.load %arg14[%c64, %c0_23] : memref<72x60xf32, #tpu.memory_space<vmem>>, vector<8x60xf32>
    tpu.vector_store %arg14[%c64, %c0_23], %23 {strides = array<i32>} : memref<72x60xf32, #tpu.memory_space<vmem>>, vector<8x60xf32>,
    %c0_24 = arith.constant 0 : index
    %c0_25 = arith.constant 0 : index
    %25 = tpu.strided_load %arg14[%c0_24, %c0_25] {strides = array<i32: 2, 1>} : memref<72x60xf32, #tpu.memory_space<vmem>>, vector<32x60xf32>
    %c1_26 = arith.constant 1 : index
    %c0_27 = arith.constant 0 : index
    %26 = tpu.strided_load %arg14[%c1_26, %c0_27] {strides = array<i32: 2, 1>} : memref<72x60xf32, #tpu.memory_space<vmem>>, vector<32x60xf32>
    %c2_28 = arith.constant 2 : index
    %c0_29 = arith.constant 0 : index
    %27 = tpu.strided_load %arg14[%c2_28, %c0_29] {strides = array<i32: 2, 1>} : memref<72x60xf32, #tpu.memory_space<vmem>>, vector<32x60xf32>
    %28 = tpu.concatenate %25, %26, %27 in 1 : vector<32x60xf32>, vector<32x60xf32>, vector<32x60xf32> -> vector<32x180xf32>
    %c0_30 = arith.constant 0 : index
    %c0_31 = arith.constant 0 : index
    %29 = vector.load %arg6[%c0_30, %c0_31] : memref<180x90xf32, #tpu.memory_space<vmem>>, vector<180x90xf32>
    %cst_32 = arith.constant dense<0.000000e+00> : vector<32x90xf32>
    %30 = tpu.matmul %28, %29, %cst_32 {dimension_numbers = #tpu.dot_dimension_numbers<[1], [0], [0], [1], [0, 0, 1, 1], [], []>} : vector<32x180xf32>, vector<180x90xf32>, vector<32x90xf32> -> vector<32x90xf32>
    %c0_33 = arith.constant 0 : index
    %c0_34 = arith.constant 0 : index
    %31 = vector.load %arg7[%c0_33, %c0_34] : memref<1x90xf32, #tpu.memory_space<vmem>>, vector<1x90xf32>
    %32 = vector.broadcast %31 : vector<1x90xf32> to vector<32x90xf32>
    %33 = arith.addf %30, %32 : vector<32x90xf32>
    %cst_35 = arith.constant 0.000000e+00 : f32
    %34 = vector.broadcast %cst_35 : f32 to vector<32x90xf32>
    %35 = arith.maximumf %33, %34 : vector<32x90xf32>
    %36 = tpu.iota {dimensions = array<i32: 0>} : vector<32x1xi32>
    %c16_i32 = arith.constant 16 : i32
    %c0_i32 = arith.constant 0 : i32
    %37 = arith.cmpi eq, %c16_i32, %c0_i32 : i32
    %c1_i32 = arith.constant 1 : i32
    %38 = arith.select %37, %c1_i32, %c16_i32 : i32
    %39 = vector.broadcast %38 : i32 to vector<32x1xi32>
    %40 = arith.remsi %36, %39 : vector<32x1xi32>
    %c0_i32_36 = arith.constant 0 : i32
    %41 = vector.broadcast %c0_i32_36 : i32 to vector<32x1xi32>
    %42 = arith.cmpi ne, %40, %41 : vector<32x1xi32>
    %c0_i32_37 = arith.constant 0 : i32
    %43 = vector.broadcast %c0_i32_37 : i32 to vector<32x1xi32>
    %44 = arith.cmpi slt, %40, %43 : vector<32x1xi32>
    %c0_i32_38 = arith.constant 0 : i32
    %45 = arith.cmpi slt, %38, %c0_i32_38 : i32
    %46 = vector.broadcast %45 : i1 to vector<32x1xi1>
    %47 = vector.broadcast %46 : vector<32x1xi1> to vector<32x1xi1>
    %48 = arith.xori %44, %47 : vector<32x1xi1>
    %49 = arith.andi %48, %42 : vector<32x1xi1>
    %50 = vector.broadcast %38 : i32 to vector<32x1xi32>
    %51 = arith.addi %40, %50 : vector<32x1xi32>
    %52 = arith.select %49, %51, %40 : vector<32x1xi1>, vector<32x1xi32>
    %c11_i32 = arith.constant 11 : i32
    %53 = vector.broadcast %c11_i32 : i32 to vector<32x1xi32>
    %54 = arith.cmpi slt, %52, %53 : vector<32x1xi32>
    %cst_39 = arith.constant 0.000000e+00 : f32
    %55 = vector.shape_cast %54 : vector<32x1xi1> to vector<32x1xi1>
    %56 = vector.broadcast %55 : vector<32x1xi1> to vector<32x90xi1>
    %57 = vector.broadcast %cst_39 : f32 to vector<32x90xf32>
    %58 = arith.select %56, %35, %57 : vector<32x90xi1>, vector<32x90xf32>
    %c0_40 = arith.constant 0 : index
    %c0_41 = arith.constant 0 : index
    %59 = vector.load %arg15[%c0_40, %c0_41] : memref<32x90xf32, #tpu.memory_space<vmem>>, vector<32x90xf32>
    tpu.vector_store %arg15[%c0_40, %c0_41], %58 {strides = array<i32>} : memref<32x90xf32, #tpu.memory_space<vmem>>, vector<32x90xf32>,
    %c0_42 = arith.constant 0 : index
    %c0_43 = arith.constant 0 : index
    %60 = tpu.strided_load %arg15[%c0_42, %c0_43] {strides = array<i32: 2, 1>} : memref<32x90xf32, #tpu.memory_space<vmem>>, vector<16x90xf32>
    %c1_44 = arith.constant 1 : index
    %c0_45 = arith.constant 0 : index
    %61 = tpu.strided_load %arg15[%c1_44, %c0_45] {strides = array<i32: 2, 1>} : memref<32x90xf32, #tpu.memory_space<vmem>>, vector<16x90xf32>
    %62 = arith.maximumf %60, %61 : vector<16x90xf32>
    %c0_46 = arith.constant 0 : index
    %c0_47 = arith.constant 0 : index
    %63 = vector.load %arg16[%c0_46, %c0_47] : memref<16x90xf32, #tpu.memory_space<vmem>>, vector<16x90xf32>
    tpu.vector_store %arg16[%c0_46, %c0_47], %62 {strides = array<i32>} : memref<16x90xf32, #tpu.memory_space<vmem>>, vector<16x90xf32>,
    %c0_48 = arith.constant 0 : index
    %c0_49 = arith.constant 0 : index
    %64 = tpu.strided_load %arg16[%c0_48, %c0_49] {strides = array<i32: 2, 1>} : memref<16x90xf32, #tpu.memory_space<vmem>>, vector<8x90xf32>
    %c1_50 = arith.constant 1 : index
    %c0_51 = arith.constant 0 : index
    %65 = tpu.strided_load %arg16[%c1_50, %c0_51] {strides = array<i32: 2, 1>} : memref<16x90xf32, #tpu.memory_space<vmem>>, vector<8x90xf32>
    %66 = arith.maximumf %64, %65 : vector<8x90xf32>
    %c0_52 = arith.constant 0 : index
    %c0_53 = arith.constant 0 : index
    %67 = vector.load %arg17[%c0_52, %c0_53] : memref<8x90xf32, #tpu.memory_space<vmem>>, vector<8x90xf32>
    tpu.vector_store %arg17[%c0_52, %c0_53], %66 {strides = array<i32>} : memref<8x90xf32, #tpu.memory_space<vmem>>, vector<8x90xf32>,
    %c0_54 = arith.constant 0 : index
    %c0_55 = arith.constant 0 : index
    %68 = tpu.strided_load %arg17[%c0_54, %c0_55] {strides = array<i32: 2, 1>} : memref<8x90xf32, #tpu.memory_space<vmem>>, vector<4x90xf32>
    %c1_56 = arith.constant 1 : index
    %c0_57 = arith.constant 0 : index
    %69 = tpu.strided_load %arg17[%c1_56, %c0_57] {strides = array<i32: 2, 1>} : memref<8x90xf32, #tpu.memory_space<vmem>>, vector<4x90xf32>
    %70 = arith.maximumf %68, %69 : vector<4x90xf32>
    %c0_58 = arith.constant 0 : index
    %c0_59 = arith.constant 0 : index
    %71 = vector.load %arg18[%c0_58, %c0_59] : memref<4x90xf32, #tpu.memory_space<vmem>>, vector<4x90xf32>
    tpu.vector_store %arg18[%c0_58, %c0_59], %70 {strides = array<i32>} : memref<4x90xf32, #tpu.memory_space<vmem>>, vector<4x90xf32>,
    %c0_60 = arith.constant 0 : index
    %c0_61 = arith.constant 0 : index
    %72 = tpu.strided_load %arg18[%c0_60, %c0_61] {strides = array<i32: 2, 1>} : memref<4x90xf32, #tpu.memory_space<vmem>>, vector<2x90xf32>
    %c1_62 = arith.constant 1 : index
    %c0_63 = arith.constant 0 : index
    %73 = tpu.strided_load %arg18[%c1_62, %c0_63] {strides = array<i32: 2, 1>} : memref<4x90xf32, #tpu.memory_space<vmem>>, vector<2x90xf32>
    %74 = arith.maximumf %72, %73 : vector<2x90xf32>
    %c0_64 = arith.constant 0 : index
    %c0_65 = arith.constant 0 : index
    %75 = vector.load %arg8[%c0_64, %c0_65] : memref<90x30xf32, #tpu.memory_space<vmem>>, vector<90x30xf32>
    %cst_66 = arith.constant dense<0.000000e+00> : vector<2x30xf32>
    %76 = tpu.matmul %74, %75, %cst_66 {dimension_numbers = #tpu.dot_dimension_numbers<[1], [0], [0], [1], [0, 0, 1, 1], [], []>} : vector<2x90xf32>, vector<90x30xf32>, vector<2x30xf32> -> vector<2x30xf32>
    %c0_67 = arith.constant 0 : index
    %c0_68 = arith.constant 0 : index
    %77 = vector.load %arg9[%c0_67, %c0_68] : memref<1x30xf32, #tpu.memory_space<vmem>>, vector<1x30xf32>
    %78 = vector.broadcast %77 : vector<1x30xf32> to vector<2x30xf32>
    %79 = arith.addf %76, %78 : vector<2x30xf32>
    %cst_69 = arith.constant 0.000000e+00 : f32
    %80 = vector.broadcast %cst_69 : f32 to vector<2x30xf32>
    %81 = arith.maximumf %79, %80 : vector<2x30xf32>
    %c0_70 = arith.constant 0 : index
    %c0_71 = arith.constant 0 : index
    %82 = vector.load %arg10[%c0_70, %c0_71] : memref<1x30xf32, #tpu.memory_space<vmem>>, vector<1x30xf32>
    %83 = tpu.transpose %81, [1, 0] : vector<2x30xf32> -> vector<30x2xf32>
    %cst_72 = arith.constant dense<0.000000e+00> : vector<1x2xf32>
    %84 = tpu.matmul %82, %83, %cst_72 {dimension_numbers = #tpu.dot_dimension_numbers<[1], [0], [0], [1], [0, 0, 1, 1], [], []>} : vector<1x30xf32>, vector<30x2xf32>, vector<1x2xf32> -> vector<1x2xf32>
    %c0_73 = arith.constant 0 : index
    %c0_74 = arith.constant 0 : index
    %85 = vector.load %arg11[%c0_73, %c0_74] : memref<1x1xf32, #tpu.memory_space<vmem>>, vector<1x1xf32>
    %86 = vector.broadcast %85 : vector<1x1xf32> to vector<1x2xf32>
    %87 = arith.addf %84, %86 : vector<1x2xf32>
    %c0_75 = arith.constant 0 : index
    %c0_76 = arith.constant 0 : index
    %c0_77 = arith.constant 0 : index
    %88 = vector.load %arg12[%c0_75, %c0_76, %c0_77] : memref<1x1x2xf32, #tpu.memory_space<vmem>>, vector<1x1x2xf32>
    %89 = vector.shape_cast %88 : vector<1x1x2xf32> to vector<1x2xf32>
    %90 = vector.shape_cast %87 : vector<1x2xf32> to vector<1x1x2xf32>
    tpu.vector_store %arg12[%c0_75, %c0_76, %c0_77], %90 {strides = array<i32>} : memref<1x1x2xf32, #tpu.memory_space<vmem>>, vector<1x1x2xf32>,
    return
  }
  func.func @transform_0(%arg0: i32) -> (i32, i32) {
    %c0_i32 = arith.constant 0 : i32
    %c0_i32_0 = arith.constant 0 : i32
    return %arg0, %c0_i32 : i32, i32
  }
  func.func @transform_1(%arg0: i32) -> (i32, i32) {
    %c0_i32 = arith.constant 0 : i32
    %c0_i32_0 = arith.constant 0 : i32
    %c0_i32_1 = arith.constant 0 : i32
    return %c0_i32, %c0_i32_0 : i32, i32
  }
  func.func @transform_2(%arg0: i32) -> (i32, i32) {
    %c0_i32 = arith.constant 0 : i32
    %c0_i32_0 = arith.constant 0 : i32
    %c0_i32_1 = arith.constant 0 : i32
    return %c0_i32, %c0_i32_0 : i32, i32
  }
  func.func @transform_3(%arg0: i32) -> (i32, i32) {
    %c0_i32 = arith.constant 0 : i32
    %c0_i32_0 = arith.constant 0 : i32
    %c0_i32_1 = arith.constant 0 : i32
    return %c0_i32, %c0_i32_0 : i32, i32
  }
  func.func @transform_4(%arg0: i32) -> (i32, i32) {
    %c0_i32 = arith.constant 0 : i32
    %c0_i32_0 = arith.constant 0 : i32
    %c0_i32_1 = arith.constant 0 : i32
    return %c0_i32, %c0_i32_0 : i32, i32
  }
  func.func @transform_5(%arg0: i32) -> (i32, i32) {
    %c0_i32 = arith.constant 0 : i32
    %c0_i32_0 = arith.constant 0 : i32
    %c0_i32_1 = arith.constant 0 : i32
    return %c0_i32, %c0_i32_0 : i32, i32
  }
  func.func @transform_6(%arg0: i32) -> (i32, i32) {
    %c0_i32 = arith.constant 0 : i32
    %c0_i32_0 = arith.constant 0 : i32
    %c0_i32_1 = arith.constant 0 : i32
    return %c0_i32, %c0_i32_0 : i32, i32
  }
  func.func @transform_7(%arg0: i32) -> (i32, i32) {
    %c0_i32 = arith.constant 0 : i32
    %c0_i32_0 = arith.constant 0 : i32
    %c0_i32_1 = arith.constant 0 : i32
    return %c0_i32, %c0_i32_0 : i32, i32
  }
  func.func @transform_8(%arg0: i32) -> (i32, i32) {
    %c0_i32 = arith.constant 0 : i32
    %c0_i32_0 = arith.constant 0 : i32
    %c0_i32_1 = arith.constant 0 : i32
    return %c0_i32, %c0_i32_0 : i32, i32
  }
  func.func @transform_9(%arg0: i32) -> (i32, i32) {
    %c0_i32 = arith.constant 0 : i32
    %c0_i32_0 = arith.constant 0 : i32
    %c0_i32_1 = arith.constant 0 : i32
    return %c0_i32, %c0_i32_0 : i32, i32
  }
  func.func @transform_10(%arg0: i32) -> (i32, i32) {
    %c0_i32 = arith.constant 0 : i32
    %c0_i32_0 = arith.constant 0 : i32
    %c0_i32_1 = arith.constant 0 : i32
    return %c0_i32, %c0_i32_0 : i32, i32
  }
  func.func @transform_11(%arg0: i32) -> (i32, i32, i32) {
    %c0_i32 = arith.constant 0 : i32
    %c0_i32_0 = arith.constant 0 : i32
    %c0_i32_1 = arith.constant 0 : i32
    return %arg0, %c0_i32, %c0_i32_0 : i32, i32, i32
  }
}

</mosaic_0001>

<llo_original>
// kernel: all_conv_forward.1
$region0: #{all_conv_forward.1}
  #allocation0 [shape = 'u32[]', space=smem, size = 0x4, offset = 0x4, fixed_abs, tag = 'smem constant byte address 0x4 - core index']
  #allocation1 [shape = 'u32[144,128]{1,0:T(1,128)}', space=vmem, size = 0x12000, scoped, tag = 'internal scratch']
  #allocation2 [shape = 'f32[136,30]{1,0:T(8,128)}', space=vmem, size = 0x11000, scoped, tag = 'scratch operand']
  #allocation3 [shape = 'f32[72,60]{1,0:T(8,128)}', space=vmem, size = 0x9000, scoped, tag = 'scratch operand']
  #allocation4 [shape = 'f32[32,90]{1,0:T(8,128)}', space=vmem, size = 0x4000, scoped, tag = 'scratch operand']
  #allocation5 [shape = 'f32[16,90]{1,0:T(8,128)}', space=vmem, size = 0x2000, scoped, tag = 'scratch operand']
  #allocation6 [shape = 'f32[8,90]{1,0:T(8,128)}', space=vmem, size = 0x1000, scoped, tag = 'scratch operand']
  #allocation7 [shape = 'f32[4,90]{1,0:T(4,128)}', space=vmem, size = 0x800, scoped, tag = 'scratch operand']
  #allocation8 [shape = 'f32[1,1]{1,0:T(1,128)S(1)}', space=vmem, size = 0x200, scoped, tag = 'scoped memory for all_conv_forward.1']
  %s0 = inlined_call_operand.vmem [shape: f32[128,39], index: 0, kind: input, shape index: {}]
  %s1 = inlined_call_operand.vmem [shape: f32[39,30], index: 1, kind: input, shape index: {}]
  %s2 = inlined_call_operand.vmem [shape: f32[1,30], index: 2, kind: input, shape index: {}]
  %s3 = inlined_call_operand.vmem [shape: f32[90,60], index: 3, kind: input, shape index: {}]
  %s4 = inlined_call_operand.vmem [shape: f32[1,60], index: 4, kind: input, shape index: {}]
  %s5 = inlined_call_operand.vmem [shape: f32[180,90], index: 5, kind: input, shape index: {}]
  %s6 = inlined_call_operand.vmem [shape: f32[1,90], index: 6, kind: input, shape index: {}]
  %s7 = inlined_call_operand.vmem [shape: f32[90,30], index: 7, kind: input, shape index: {}]
  %s8 = inlined_call_operand.vmem [shape: f32[1,30], index: 8, kind: input, shape index: {}]
  %s9 = inlined_call_operand.vmem [shape: f32[1,30], index: 9, kind: input, shape index: {}]
  %s10 = inlined_call_operand.<no memory space> [shape: f32[1,1], index: 10, kind: input, shape index: {}]
  %s11 = inlined_call_operand.hbm [shape: f32[1,1,2], index: 11, kind: output, shape index: {}]
  %s12 = sld [smem:[#allocation0]]
  $region54: #{all_conv_forward.1} parent=0
    _
  %s14 = ssub.s32 1, %s12
  %s15 = scalar_select 0, %s14, %s12
  %v16 = vstv %s10
  %17 = vst [vmem:[#allocation8] sm:$0x1] %v16
  $region1: #{all_conv_forward.1} parent=0
    #allocation9 [shape = 'u8[512]{0}', space=vmem, size = 0x400, scoped, tag = 'output window, operand 0, single buffered']
    #allocation10 [shape = 's32[1]{0}', space=sflag, size = 0x4, scoped, tag = 'scoped memory for all_conv_forward.1']
    %18 = vsyncpa [#allocation10], 0
    // Predicated region
    $region2: #{all_conv_forward.1} parent=1 // pred_check
      _
    $region3: #{all_conv_forward.1} parent=1 // pred_check_branch
      %20 = sbr.rel (0) target = $region5
    $region4: #{all_conv_forward.1} parent=1 // pred_region
      _
    $region5: #{all_conv_forward.1} parent=1 // pred_fallthru
      _
    // Predicated region
    $region6: #{all_conv_forward.1} parent=1 // pred_check
      _
    $region7: #{all_conv_forward.1} parent=1 // pred_check_branch
      %22 = sbr.rel (0) target = $region9
    $region8: #{all_conv_forward.1} parent=1 // pred_region
      _
    $region9: #{all_conv_forward.1} parent=1 // pred_fallthru
      _
    // Predicated region
    $region10: #{all_conv_forward.1} parent=1 // pred_check
      _
    $region11: #{all_conv_forward.1} parent=1 // pred_check_branch
      %24 = sbr.rel (0) target = $region13
    $region12: #{all_conv_forward.1} parent=1 // pred_region
      _
    $region13: #{all_conv_forward.1} parent=1 // pred_fallthru
      _
    // Predicated region
    $region14: #{all_conv_forward.1} parent=1 // pred_check
      _
    $region15: #{all_conv_forward.1} parent=1 // pred_check_branch
      %26 = sbr.rel (0) target = $region17
    $region16: #{all_conv_forward.1} parent=1 // pred_region
      _
    $region17: #{all_conv_forward.1} parent=1 // pred_fallthru
      _
    // Predicated region
    $region18: #{all_conv_forward.1} parent=1 // pred_check
      _
    $region19: #{all_conv_forward.1} parent=1 // pred_check_branch
      %28 = sbr.rel (0) target = $region21
    $region20: #{all_conv_forward.1} parent=1 // pred_region
      _
    $region21: #{all_conv_forward.1} parent=1 // pred_fallthru
      _
    // Predicated region
    $region22: #{all_conv_forward.1} parent=1 // pred_check
      _
    $region23: #{all_conv_forward.1} parent=1 // pred_check_branch
      %30 = sbr.rel (0) target = $region25
    $region24: #{all_conv_forward.1} parent=1 // pred_region
      _
    $region25: #{all_conv_forward.1} parent=1 // pred_fallthru
      _
    // Predicated region
    $region26: #{all_conv_forward.1} parent=1 // pred_check
      _
    $region27: #{all_conv_forward.1} parent=1 // pred_check_branch
      %32 = sbr.rel (0) target = $region29
    $region28: #{all_conv_forward.1} parent=1 // pred_region
      _
    $region29: #{all_conv_forward.1} parent=1 // pred_fallthru
      _
    // Predicated region
    $region30: #{all_conv_forward.1} parent=1 // pred_check
      _
    $region31: #{all_conv_forward.1} parent=1 // pred_check_branch
      %34 = sbr.rel (0) target = $region33
    $region32: #{all_conv_forward.1} parent=1 // pred_region
      _
    $region33: #{all_conv_forward.1} parent=1 // pred_fallthru
      _
    // Predicated region
    $region34: #{all_conv_forward.1} parent=1 // pred_check
      _
    $region35: #{all_conv_forward.1} parent=1 // pred_check_branch
      %36 = sbr.rel (0) target = $region37
    $region36: #{all_conv_forward.1} parent=1 // pred_region
      _
    $region37: #{all_conv_forward.1} parent=1 // pred_fallthru
      _
    // Predicated region
    $region38: #{all_conv_forward.1} parent=1 // pred_check
      _
    $region39: #{all_conv_forward.1} parent=1 // pred_check_branch
      %38 = sbr.rel (0) target = $region41
    $region40: #{all_conv_forward.1} parent=1 // pred_region
      _
    $region41: #{all_conv_forward.1} parent=1 // pred_fallthru
      _
    // Predicated region
    $region42: #{all_conv_forward.1} parent=1 // pred_check
      _
    $region43: #{all_conv_forward.1} parent=1 // pred_check_branch
      %40 = sbr.rel (0) target = $region45
    $region44: #{all_conv_forward.1} parent=1 // pred_region
      _
    $region45: #{all_conv_forward.1} parent=1 // pred_fallthru
      _
    %v41 = vld [vmem:[%s0] sm:$0xff]
    %v42 = vld [vmem:[%s0 + $0x8] sm:$0xff]
    %v43 = vld [vmem:[%s0 + $0x10] sm:$0xff]
    %v44 = vld [vmem:[%s0 + $0x18] sm:$0xff]
    %v45 = vld [vmem:[%s0 + $0x20] sm:$0xff]
    %v46 = vld [vmem:[%s0 + $0x28] sm:$0xff]
    %v47 = vld [vmem:[%s0 + $0x30] sm:$0xff]
    %v48 = vld [vmem:[%s0 + $0x38] sm:$0xff]
    %v49 = vld [vmem:[%s0 + $0x40] sm:$0xff]
    %v50 = vld [vmem:[%s0 + $0x48] sm:$0xff]
    %v51 = vld [vmem:[%s0 + $0x50] sm:$0xff]
    %v52 = vld [vmem:[%s0 + $0x58] sm:$0xff]
    %v53 = vld [vmem:[%s0 + $0x60] sm:$0xff]
    %v54 = vld [vmem:[%s0 + $0x68] sm:$0xff]
    %v55 = vld [vmem:[%s0 + $0x70] sm:$0xff]
    %v56 = vld [vmem:[%s0 + $0x78] sm:$0xff]
    %v57 = vld [vmem:[%s1] sm:$0xff]
    %v58 = vld [vmem:[%s1 + $0x8] sm:$0xff]
    %v59 = vld [vmem:[%s1 + $0x10] sm:$0xff]
    %v60 = vld [vmem:[%s1 + $0x18] sm:$0xff]
    %v61 = vld [vmem:[%s1 + $0x20] sm:$0x7f]
    %v62 = vld [vmem:[%s2] sm:$0x1]
    %v64 = vlaneseq
    %v65 = vshrl.u32 %v64, 7
    %v66 = vsub.s32 0, %v65
    %v67 = vrot.slane %v62, %v66
    %vm69 = vcmask 318464
    %v71 = vsel %vm69, %v41, 0
    %v74 = vsel %vm69, %v42, 0
    %v77 = vsel %vm69, %v43, 0
    %v80 = vsel %vm69, %v44, 0
    %v83 = vsel %vm69, %v45, 0
    %v86 = vsel %vm69, %v46, 0
    %v89 = vsel %vm69, %v47, 0
    %v92 = vsel %vm69, %v48, 0
    %v95 = vsel %vm69, %v49, 0
    %v98 = vsel %vm69, %v50, 0
    %v101 = vsel %vm69, %v51, 0
    %v104 = vsel %vm69, %v52, 0
    %v107 = vsel %vm69, %v53, 0
    %v110 = vsel %vm69, %v54, 0
    %v113 = vsel %vm69, %v55, 0
    %v116 = vsel %vm69, %v56, 0
    %vm118 = vcmask 1046528
    %v120 = vsel %vm118, %v61, 0
    %122 = vmatprep.subr.mxu0 0.0
    %123 = vmatpush1.msra.mxu0 %v57
    %124 = vmatprep.subr.mxu0 0.0
    %125 = vmatpush1.msra.mxu0 %v58
    %126 = vmatprep.subr.mxu0 0.0
    %127 = vmatpush1.msra.mxu0 %v59
    %128 = vmatprep.subr.mxu0 0.0
    %129 = vmatpush1.msra.mxu0 %v60
    %130 = vmatprep.subr.mxu0 0.0
    %131 = vmatpush1.msra.mxu0 %v120
    %132 = vmatprep.subr.mxu0 0.0
    %133 = vmatpush1.msra.mxu0 0.0
    %134 = vmatprep.subr.mxu0 0.0
    %135 = vmatpush1.msra.mxu0 0.0
    %136 = vmatprep.subr.mxu0 0.0
    %137 = vmatpush1.msra.mxu0 0.0
    %138 = vmatprep.subr.mxu0 0.0
    %139 = vmatpush1.msra.mxu0 0.0
    %140 = vmatprep.subr.mxu0 0.0
    %141 = vmatpush1.msra.mxu0 0.0
    %142 = vmatprep.subr.mxu0 0.0
    %143 = vmatpush1.msra.mxu0 0.0
    %144 = vmatprep.subr.mxu0 0.0
    %145 = vmatpush1.msra.mxu0 0.0
    %146 = vmatprep.subr.mxu0 0.0
    %147 = vmatpush1.msra.mxu0 0.0
    %148 = vmatprep.subr.mxu0 0.0
    %149 = vmatpush1.msra.mxu0 0.0
    %150 = vmatprep.subr.mxu0 0.0
    %151 = vmatpush1.msra.mxu0 0.0
    %152 = vmatprep.subr.mxu0 0.0
    %153 = vmatpush1.msra.mxu0 0.0
    %154 = vmatprep.subr.mxu0 0.0
    %155 = vmatpush1.msra.mxu0 0.0
    %156 = vmatprep.subr.mxu0 0.0
    %157 = vmatpush1.msra.mxu0 0.0
    %158 = vmatprep.subr.mxu0 0.0
    %159 = vmatpush1.msra.mxu0 0.0
    %160 = vmatprep.subr.mxu0 0.0
    %161 = vmatpush1.msra.mxu0 0.0
    %162 = vmatprep.subr.mxu0 0.0
    %163 = vmatpush1.msra.mxu0 0.0
    %164 = vmatprep.subr.mxu0 0.0
    %165 = vmatpush1.msra.mxu0 0.0
    %166 = vmatprep.subr.mxu0 0.0
    %167 = vmatpush1.msra.mxu0 0.0
    %168 = vmatprep.subr.mxu0 0.0
    %169 = vmatpush1.msra.mxu0 0.0
    %170 = vmatprep.subr.mxu0 0.0
    %171 = vmatpush1.msra.mxu0 0.0
    %172 = vmatprep.subr.mxu0 0.0
    %173 = vmatpush1.msra.mxu0 0.0
    %174 = vmatprep.subr.mxu0 0.0
    %175 = vmatpush1.msra.mxu0 0.0
    %176 = vmatprep.subr.mxu0 0.0
    %177 = vmatpush1.msra.mxu0 0.0
    %178 = vmatprep.subr.mxu0 0.0
    %179 = vmatpush1.msra.mxu0 0.0
    %180 = vmatprep.subr.mxu0 0.0
    %181 = vmatpush1.msra.mxu0 0.0
    %182 = vmatprep.subr.mxu0 0.0
    %183 = vmatpush1.msra.mxu0 0.0
    %184 = vmatprep.subr.mxu0 0.0
    %185 = vmatpush1.msra.mxu0 0.0
    %186 = vmatprep.mubr.f32.mxu0 0.0
    %187 = vmatmul.mubr.f32.gmra.mrb[0].mxu0 %v71
    %v188 = vpop.f32.mrb[0].mxu0
    %v189 = vadd.f32 %v67, %v188
    %v190 = vpop.f32.mrb[0].mxu0
    %191 = vmatprep.mubr.f32.mxu0 0.0
    %192 = vmatmul.mubr.f32.gmra.mrb[0].mxu0 %v74
    %v193 = vpop.f32.mrb[0].mxu0
    %v194 = vadd.f32 %v67, %v193
    %v195 = vpop.f32.mrb[0].mxu0
    %196 = vmatprep.mubr.f32.mxu0 0.0
    %197 = vmatmul.mubr.f32.gmra.mrb[0].mxu0 %v77
    %v198 = vpop.f32.mrb[0].mxu0
    %v199 = vadd.f32 %v67, %v198
    %v200 = vpop.f32.mrb[0].mxu0
    %201 = vmatprep.mubr.f32.mxu0 0.0
    %202 = vmatmul.mubr.f32.gmra.mrb[0].mxu0 %v80
    %v203 = vpop.f32.mrb[0].mxu0
    %v204 = vadd.f32 %v67, %v203
    %v205 = vpop.f32.mrb[0].mxu0
    %206 = vmatprep.mubr.f32.mxu0 0.0
    %207 = vmatmul.mubr.f32.gmra.mrb[0].mxu0 %v83
    %v208 = vpop.f32.mrb[0].mxu0
    %v209 = vadd.f32 %v67, %v208
    %v210 = vpop.f32.mrb[0].mxu0
    %211 = vmatprep.mubr.f32.mxu0 0.0
    %212 = vmatmul.mubr.f32.gmra.mrb[0].mxu0 %v86
    %v213 = vpop.f32.mrb[0].mxu0
    %v214 = vadd.f32 %v67, %v213
    %v215 = vpop.f32.mrb[0].mxu0
    %216 = vmatprep.mubr.f32.mxu0 0.0
    %217 = vmatmul.mubr.f32.gmra.mrb[0].mxu0 %v89
    %v218 = vpop.f32.mrb[0].mxu0
    %v219 = vadd.f32 %v67, %v218
    %v220 = vpop.f32.mrb[0].mxu0
    %221 = vmatprep.mubr.f32.mxu0 0.0
    %222 = vmatmul.mubr.f32.gmra.mrb[0].mxu0 %v92
    %v223 = vpop.f32.mrb[0].mxu0
    %v224 = vadd.f32 %v67, %v223
    %v225 = vpop.f32.mrb[0].mxu0
    %226 = vmatprep.mubr.f32.mxu0 0.0
    %227 = vmatmul.mubr.f32.gmra.mrb[0].mxu0 %v95
    %v228 = vpop.f32.mrb[0].mxu0
    %v229 = vadd.f32 %v67, %v228
    %v230 = vpop.f32.mrb[0].mxu0
    %231 = vmatprep.mubr.f32.mxu0 0.0
    %232 = vmatmul.mubr.f32.gmra.mrb[0].mxu0 %v98
    %v233 = vpop.f32.mrb[0].mxu0
    %v234 = vadd.f32 %v67, %v233
    %v235 = vpop.f32.mrb[0].mxu0
    %236 = vmatprep.mubr.f32.mxu0 0.0
    %237 = vmatmul.mubr.f32.gmra.mrb[0].mxu0 %v101
    %v238 = vpop.f32.mrb[0].mxu0
    %v239 = vadd.f32 %v67, %v238
    %v240 = vpop.f32.mrb[0].mxu0
    %241 = vmatprep.mubr.f32.mxu0 0.0
    %242 = vmatmul.mubr.f32.gmra.mrb[0].mxu0 %v104
    %v243 = vpop.f32.mrb[0].mxu0
    %v244 = vadd.f32 %v67, %v243
    %v245 = vpop.f32.mrb[0].mxu0
    %246 = vmatprep.mubr.f32.mxu0 0.0
    %247 = vmatmul.mubr.f32.gmra.mrb[0].mxu0 %v107
    %v248 = vpop.f32.mrb[0].mxu0
    %v249 = vadd.f32 %v67, %v248
    %v250 = vpop.f32.mrb[0].mxu0
    %251 = vmatprep.mubr.f32.mxu0 0.0
    %252 = vmatmul.mubr.f32.gmra.mrb[0].mxu0 %v110
    %v253 = vpop.f32.mrb[0].mxu0
    %v254 = vadd.f32 %v67, %v253
    %v255 = vpop.f32.mrb[0].mxu0
    %256 = vmatprep.mubr.f32.mxu0 0.0
    %257 = vmatmul.mubr.f32.gmra.mrb[0].mxu0 %v113
    %v258 = vpop.f32.mrb[0].mxu0
    %v259 = vadd.f32 %v67, %v258
    %v260 = vpop.f32.mrb[0].mxu0
    %261 = vmatprep.mubr.f32.mxu0 0.0
    %262 = vmatmul.mubr.f32.gmra.mrb[0].mxu0 %v116
    %v263 = vpop.f32.mrb[0].mxu0
    %v264 = vadd.f32 %v67, %v263
    %v265 = vpop.f32.mrb[0].mxu0
    %266 = vdwg.mxu0
    %v267 = vmax.f32 %v189, 0.0
    %v268 = vmax.f32 %v194, 0.0
    %v269 = vmax.f32 %v199, 0.0
    %v270 = vmax.f32 %v204, 0.0
    %v271 = vmax.f32 %v209, 0.0
    %v272 = vmax.f32 %v214, 0.0
    %v273 = vmax.f32 %v219, 0.0
    %v274 = vmax.f32 %v224, 0.0
    %v275 = vmax.f32 %v229, 0.0
    %v276 = vmax.f32 %v234, 0.0
    %v277 = vmax.f32 %v239, 0.0
    %v278 = vmax.f32 %v244, 0.0
    %v279 = vmax.f32 %v249, 0.0
    %v280 = vmax.f32 %v254, 0.0
    %v281 = vmax.f32 %v259, 0.0
    %v282 = vmax.f32 %v264, 0.0
    %vm283 = vcmask 244736
    %284 = vst.msk [vmem:[#allocation2] sm:$0xff] %vm283, %v267
    %285 = vst.msk [vmem:[#allocation2 + $0x8] sm:$0xff] %vm283, %v268
    %286 = vst.msk [vmem:[#allocation2 + $0x10] sm:$0xff] %vm283, %v269
    %287 = vst.msk [vmem:[#allocation2 + $0x18] sm:$0xff] %vm283, %v270
    %288 = vst.msk [vmem:[#allocation2 + $0x20] sm:$0xff] %vm283, %v271
    %289 = vst.msk [vmem:[#allocation2 + $0x28] sm:$0xff] %vm283, %v272
    %290 = vst.msk [vmem:[#allocation2 + $0x30] sm:$0xff] %vm283, %v273
    %291 = vst.msk [vmem:[#allocation2 + $0x38] sm:$0xff] %vm283, %v274
    %292 = vst.msk [vmem:[#allocation2 + $0x40] sm:$0xff] %vm283, %v275
    %293 = vst.msk [vmem:[#allocation2 + $0x48] sm:$0xff] %vm283, %v276
    %294 = vst.msk [vmem:[#allocation2 + $0x50] sm:$0xff] %vm283, %v277
    %295 = vst.msk [vmem:[#allocation2 + $0x58] sm:$0xff] %vm283, %v278
    %296 = vst.msk [vmem:[#allocation2 + $0x60] sm:$0xff] %vm283, %v279
    %297 = vst.msk [vmem:[#allocation2 + $0x68] sm:$0xff] %vm283, %v280
    %298 = vst.msk [vmem:[#allocation2 + $0x70] sm:$0xff] %vm283, %v281
    %299 = vst.msk [vmem:[#allocation2 + $0x78] sm:$0xff] %vm283, %v282
    %300 = vst.msk [vmem:[#allocation2 + $0x80] sm:$0xff] %vm283, 0.0
    %v301 = vld [vmem:[#allocation2] ss:$2 sm:$0xff]
    %s302 = scalar_lea.vmem [#allocation2], 16
    %v303 = vld [vmem:[%s302] ss:$2 sm:$0xff]
    %s304 = scalar_lea.vmem [#allocation2], 32
    %v305 = vld [vmem:[%s304] ss:$2 sm:$0xff]
    %s306 = scalar_lea.vmem [#allocation2], 48
    %v307 = vld [vmem:[%s306] ss:$2 sm:$0xff]
    %s308 = scalar_lea.vmem [#allocation2], 64
    %v309 = vld [vmem:[%s308] ss:$2 sm:$0xff]
    %s310 = scalar_lea.vmem [#allocation2], 80
    %v311 = vld [vmem:[%s310] ss:$2 sm:$0xff]
    %s312 = scalar_lea.vmem [#allocation2], 96
    %v313 = vld [vmem:[%s312] ss:$2 sm:$0xff]
    %s314 = scalar_lea.vmem [#allocation2], 112
    %v315 = vld [vmem:[%s314] ss:$2 sm:$0xff]
    %s316 = scalar_lea.vmem [#allocation2], 1
    %v317 = vld [vmem:[%s316] ss:$2 sm:$0xff]
    %s318 = scalar_lea.vmem [#allocation2], 17
    %v319 = vld [vmem:[%s318] ss:$2 sm:$0xff]
    %s320 = scalar_lea.vmem [#allocation2], 33
    %v321 = vld [vmem:[%s320] ss:$2 sm:$0xff]
    %s322 = scalar_lea.vmem [#allocation2], 49
    %v323 = vld [vmem:[%s322] ss:$2 sm:$0xff]
    %s324 = scalar_lea.vmem [#allocation2], 65
    %v325 = vld [vmem:[%s324] ss:$2 sm:$0xff]
    %s326 = scalar_lea.vmem [#allocation2], 81
    %v327 = vld [vmem:[%s326] ss:$2 sm:$0xff]
    %s328 = scalar_lea.vmem [#allocation2], 97
    %v329 = vld [vmem:[%s328] ss:$2 sm:$0xff]
    %s330 = scalar_lea.vmem [#allocation2], 113
    %v331 = vld [vmem:[%s330] ss:$2 sm:$0xff]
    %s332 = scalar_lea.vmem [#allocation2], 2
    %v333 = vld [vmem:[%s332] ss:$2 sm:$0xff]
    %s334 = scalar_lea.vmem [#allocation2], 18
    %v335 = vld [vmem:[%s334] ss:$2 sm:$0xff]
    %s336 = scalar_lea.vmem [#allocation2], 34
    %v337 = vld [vmem:[%s336] ss:$2 sm:$0xff]
    %s338 = scalar_lea.vmem [#allocation2], 50
    %v339 = vld [vmem:[%s338] ss:$2 sm:$0xff]
    %s340 = scalar_lea.vmem [#allocation2], 66
    %v341 = vld [vmem:[%s340] ss:$2 sm:$0xff]
    %s342 = scalar_lea.vmem [#allocation2], 82
    %v343 = vld [vmem:[%s342] ss:$2 sm:$0xff]
    %s344 = scalar_lea.vmem [#allocation2], 98
    %v345 = vld [vmem:[%s344] ss:$2 sm:$0xff]
    %s346 = scalar_lea.vmem [#allocation2], 114
    %v347 = vld [vmem:[%s346] ss:$2 sm:$0xff]
    %356 = vrot.lane.b32.xlu0 %v317, 30
    %v357 = vpop.permute.xlu0 %356
    %358 = vrot.lane.b32.xlu0 %v319, 30
    %v359 = vpop.permute.xlu0 %358
    %360 = vrot.lane.b32.xlu0 %v321, 30
    %v361 = vpop.permute.xlu0 %360
    %362 = vrot.lane.b32.xlu0 %v323, 30
    %v363 = vpop.permute.xlu0 %362
    %364 = vrot.lane.b32.xlu0 %v325, 30
    %v365 = vpop.permute.xlu0 %364
    %366 = vrot.lane.b32.xlu0 %v327, 30
    %v367 = vpop.permute.xlu0 %366
    %368 = vrot.lane.b32.xlu0 %v329, 30
    %v369 = vpop.permute.xlu0 %368
    %370 = vrot.lane.b32.xlu0 %v331, 30
    %v371 = vpop.permute.xlu0 %370
    %388 = vrot.lane.b32.xlu0 %v333, 60
    %v389 = vpop.permute.xlu0 %388
    %390 = vrot.lane.b32.xlu0 %v335, 60
    %v391 = vpop.permute.xlu0 %390
    %392 = vrot.lane.b32.xlu0 %v337, 60
    %v393 = vpop.permute.xlu0 %392
    %394 = vrot.lane.b32.xlu0 %v339, 60
    %v395 = vpop.permute.xlu0 %394
    %396 = vrot.lane.b32.xlu0 %v341, 60
    %v397 = vpop.permute.xlu0 %396
    %398 = vrot.lane.b32.xlu0 %v343, 60
    %v399 = vpop.permute.xlu0 %398
    %400 = vrot.lane.b32.xlu0 %v345, 60
    %v401 = vpop.permute.xlu0 %400
    %402 = vrot.lane.b32.xlu0 %v347, 60
    %v403 = vpop.permute.xlu0 %402
    %v412 = vsel %vm283, %v301, %v357
    %v413 = vsel %vm283, %v303, %v359
    %v414 = vsel %vm283, %v305, %v361
    %v415 = vsel %vm283, %v307, %v363
    %v416 = vsel %vm283, %v309, %v365
    %v417 = vsel %vm283, %v311, %v367
    %v418 = vsel %vm283, %v313, %v369
    %v419 = vsel %vm283, %v315, %v371
    %vm420 = vcmask 490496
    %v421 = vsel %vm420, %v412, %v389
    %v422 = vsel %vm420, %v413, %v391
    %v423 = vsel %vm420, %v414, %v393
    %v424 = vsel %vm420, %v415, %v395
    %v425 = vsel %vm420, %v416, %v397
    %v426 = vsel %vm420, %v417, %v399
    %v427 = vsel %vm420, %v418, %v401
    %v428 = vsel %vm420, %v419, %v403
    %v429 = vld [vmem:[%s3] sm:$0xff]
    %v430 = vld [vmem:[%s3 + $0x8] sm:$0xff]
    %v431 = vld [vmem:[%s3 + $0x10] sm:$0xff]
    %v432 = vld [vmem:[%s3 + $0x18] sm:$0xff]
    %v433 = vld [vmem:[%s3 + $0x20] sm:$0xff]
    %v434 = vld [vmem:[%s3 + $0x28] sm:$0xff]
    %v435 = vld [vmem:[%s3 + $0x30] sm:$0xff]
    %v436 = vld [vmem:[%s3 + $0x38] sm:$0xff]
    %v437 = vld [vmem:[%s3 + $0x40] sm:$0xff]
    %v438 = vld [vmem:[%s3 + $0x48] sm:$0xff]
    %v439 = vld [vmem:[%s3 + $0x50] sm:$0xff]
    %v440 = vld [vmem:[%s3 + $0x58] sm:$0x3]
    %v441 = vld [vmem:[%s4] sm:$0x1]
    %v443 = vlaneseq
    %v444 = vshrl.u32 %v443, 7
    %v445 = vsub.s32 0, %v444
    %v446 = vrot.slane %v441, %v445
    %vm448 = vcmask 736256
    %v450 = vsel %vm448, %v421, 0
    %v453 = vsel %vm448, %v422, 0
    %v456 = vsel %vm448, %v423, 0
    %v459 = vsel %vm448, %v424, 0
    %v462 = vsel %vm448, %v425, 0
    %v465 = vsel %vm448, %v426, 0
    %v468 = vsel %vm448, %v427, 0
    %v471 = vsel %vm448, %v428, 0
    %vm473 = vcmask 1041408
    %v475 = vsel %vm473, %v440, 0
    %477 = vmatprep.subr.mxu0 0.0
    %478 = vmatpush1.msra.mxu0 %v429
    %479 = vmatprep.subr.mxu0 0.0
    %480 = vmatpush1.msra.mxu0 %v430
    %481 = vmatprep.subr.mxu0 0.0
    %482 = vmatpush1.msra.mxu0 %v431
    %483 = vmatprep.subr.mxu0 0.0
    %484 = vmatpush1.msra.mxu0 %v432
    %485 = vmatprep.subr.mxu0 0.0
    %486 = vmatpush1.msra.mxu0 %v433
    %487 = vmatprep.subr.mxu0 0.0
    %488 = vmatpush1.msra.mxu0 %v434
    %489 = vmatprep.subr.mxu0 0.0
    %490 = vmatpush1.msra.mxu0 %v435
    %491 = vmatprep.subr.mxu0 0.0
    %492 = vmatpush1.msra.mxu0 %v436
    %493 = vmatprep.subr.mxu0 0.0
    %494 = vmatpush1.msra.mxu0 %v437
    %495 = vmatprep.subr.mxu0 0.0
    %496 = vmatpush1.msra.mxu0 %v438
    %497 = vmatprep.subr.mxu0 0.0
    %498 = vmatpush1.msra.mxu0 %v439
    %499 = vmatprep.subr.mxu0 0.0
    %500 = vmatpush1.msra.mxu0 %v475
    %501 = vmatprep.subr.mxu0 0.0
    %502 = vmatpush1.msra.mxu0 0.0
    %503 = vmatprep.subr.mxu0 0.0
    %504 = vmatpush1.msra.mxu0 0.0
    %505 = vmatprep.subr.mxu0 0.0
    %506 = vmatpush1.msra.mxu0 0.0
    %507 = vmatprep.subr.mxu0 0.0
    %508 = vmatpush1.msra.mxu0 0.0
    %509 = vmatprep.subr.mxu0 0.0
    %510 = vmatpush1.msra.mxu0 0.0
    %511 = vmatprep.subr.mxu0 0.0
    %512 = vmatpush1.msra.mxu0 0.0
    %513 = vmatprep.subr.mxu0 0.0
    %514 = vmatpush1.msra.mxu0 0.0
    %515 = vmatprep.subr.mxu0 0.0
    %516 = vmatpush1.msra.mxu0 0.0
    %517 = vmatprep.subr.mxu0 0.0
    %518 = vmatpush1.msra.mxu0 0.0
    %519 = vmatprep.subr.mxu0 0.0
    %520 = vmatpush1.msra.mxu0 0.0
    %521 = vmatprep.subr.mxu0 0.0
    %522 = vmatpush1.msra.mxu0 0.0
    %523 = vmatprep.subr.mxu0 0.0
    %524 = vmatpush1.msra.mxu0 0.0
    %525 = vmatprep.subr.mxu0 0.0
    %526 = vmatpush1.msra.mxu0 0.0
    %527 = vmatprep.subr.mxu0 0.0
    %528 = vmatpush1.msra.mxu0 0.0
    %529 = vmatprep.subr.mxu0 0.0
    %530 = vmatpush1.msra.mxu0 0.0
    %531 = vmatprep.subr.mxu0 0.0
    %532 = vmatpush1.msra.mxu0 0.0
    %533 = vmatprep.subr.mxu0 0.0
    %534 = vmatpush1.msra.mxu0 0.0
    %535 = vmatprep.subr.mxu0 0.0
    %536 = vmatpush1.msra.mxu0 0.0
    %537 = vmatprep.subr.mxu0 0.0
    %538 = vmatpush1.msra.mxu0 0.0
    %539 = vmatprep.subr.mxu0 0.0
    %540 = vmatpush1.msra.mxu0 0.0
    %541 = vmatprep.mubr.f32.mxu0 0.0
    %542 = vmatmul.mubr.f32.gmra.mrb[0].mxu0 %v450
    %v543 = vpop.f32.mrb[0].mxu0
    %v544 = vadd.f32 %v446, %v543
    %v545 = vpop.f32.mrb[0].mxu0
    %546 = vmatprep.mubr.f32.mxu0 0.0
    %547 = vmatmul.mubr.f32.gmra.mrb[0].mxu0 %v453
    %v548 = vpop.f32.mrb[0].mxu0
    %v549 = vadd.f32 %v446, %v548
    %v550 = vpop.f32.mrb[0].mxu0
    %551 = vmatprep.mubr.f32.mxu0 0.0
    %552 = vmatmul.mubr.f32.gmra.mrb[0].mxu0 %v456
    %v553 = vpop.f32.mrb[0].mxu0
    %v554 = vadd.f32 %v446, %v553
    %v555 = vpop.f32.mrb[0].mxu0
    %556 = vmatprep.mubr.f32.mxu0 0.0
    %557 = vmatmul.mubr.f32.gmra.mrb[0].mxu0 %v459
    %v558 = vpop.f32.mrb[0].mxu0
    %v559 = vadd.f32 %v446, %v558
    %v560 = vpop.f32.mrb[0].mxu0
    %561 = vmatprep.mubr.f32.mxu0 0.0
    %562 = vmatmul.mubr.f32.gmra.mrb[0].mxu0 %v462
    %v563 = vpop.f32.mrb[0].mxu0
    %v564 = vadd.f32 %v446, %v563
    %v565 = vpop.f32.mrb[0].mxu0
    %566 = vmatprep.mubr.f32.mxu0 0.0
    %567 = vmatmul.mubr.f32.gmra.mrb[0].mxu0 %v465
    %v568 = vpop.f32.mrb[0].mxu0
    %v569 = vadd.f32 %v446, %v568
    %v570 = vpop.f32.mrb[0].mxu0
    %571 = vmatprep.mubr.f32.mxu0 0.0
    %572 = vmatmul.mubr.f32.gmra.mrb[0].mxu0 %v468
    %v573 = vpop.f32.mrb[0].mxu0
    %v574 = vadd.f32 %v446, %v573
    %v575 = vpop.f32.mrb[0].mxu0
    %576 = vmatprep.mubr.f32.mxu0 0.0
    %577 = vmatmul.mubr.f32.gmra.mrb[0].mxu0 %v471
    %v578 = vpop.f32.mrb[0].mxu0
    %v579 = vadd.f32 %v446, %v578
    %v580 = vpop.f32.mrb[0].mxu0
    %581 = vdwg.mxu0
    %v582 = vmax.f32 %v544, 0.0
    %v583 = vmax.f32 %v549, 0.0
    %v584 = vmax.f32 %v554, 0.0
    %v585 = vmax.f32 %v559, 0.0
    %v586 = vmax.f32 %v564, 0.0
    %v587 = vmax.f32 %v569, 0.0
    %v588 = vmax.f32 %v574, 0.0
    %v589 = vmax.f32 %v579, 0.0
    %590 = vst.msk [vmem:[#allocation3] sm:$0xff] %vm420, %v582
    %591 = vst.msk [vmem:[#allocation3 + $0x8] sm:$0xff] %vm420, %v583
    %592 = vst.msk [vmem:[#allocation3 + $0x10] sm:$0xff] %vm420, %v584
    %593 = vst.msk [vmem:[#allocation3 + $0x18] sm:$0xff] %vm420, %v585
    %594 = vst.msk [vmem:[#allocation3 + $0x20] sm:$0xff] %vm420, %v586
    %595 = vst.msk [vmem:[#allocation3 + $0x28] sm:$0xff] %vm420, %v587
    %596 = vst.msk [vmem:[#allocation3 + $0x30] sm:$0xff] %vm420, %v588
    %597 = vst.msk [vmem:[#allocation3 + $0x38] sm:$0xff] %vm420, %v589
    %598 = vst.msk [vmem:[#allocation3 + $0x40] sm:$0xff] %vm420, 0.0
    %v599 = vld [vmem:[#allocation3] ss:$2 sm:$0xff]
    %s600 = scalar_lea.vmem [#allocation3], 16
    %v601 = vld [vmem:[%s600] ss:$2 sm:$0xff]
    %s602 = scalar_lea.vmem [#allocation3], 32
    %v603 = vld [vmem:[%s602] ss:$2 sm:$0xff]
    %s604 = scalar_lea.vmem [#allocation3], 48
    %v605 = vld [vmem:[%s604] ss:$2 sm:$0xff]
    %s606 = scalar_lea.vmem [#allocation3], 1
    %v607 = vld [vmem:[%s606] ss:$2 sm:$0xff]
    %s608 = scalar_lea.vmem [#allocation3], 17
    %v609 = vld [vmem:[%s608] ss:$2 sm:$0xff]
    %s610 = scalar_lea.vmem [#allocation3], 33
    %v611 = vld [vmem:[%s610] ss:$2 sm:$0xff]
    %s612 = scalar_lea.vmem [#allocation3], 49
    %v613 = vld [vmem:[%s612] ss:$2 sm:$0xff]
    %s614 = scalar_lea.vmem [#allocation3], 2
    %v615 = vld [vmem:[%s614] ss:$2 sm:$0xff]
    %s616 = scalar_lea.vmem [#allocation3], 18
    %v617 = vld [vmem:[%s616] ss:$2 sm:$0xff]
    %s618 = scalar_lea.vmem [#allocation3], 34
    %v619 = vld [vmem:[%s618] ss:$2 sm:$0xff]
    %s620 = scalar_lea.vmem [#allocation3], 50
    %v621 = vld [vmem:[%s620] ss:$2 sm:$0xff]
    %626 = vrot.lane.b32.xlu0 %v607, 60
    %v627 = vpop.permute.xlu0 %626
    %628 = vrot.lane.b32.xlu0 %v609, 60
    %v629 = vpop.permute.xlu0 %628
    %630 = vrot.lane.b32.xlu0 %v611, 60
    %v631 = vpop.permute.xlu0 %630
    %632 = vrot.lane.b32.xlu0 %v613, 60
    %v633 = vpop.permute.xlu0 %632
    %642 = vrot.lane.b32.xlu0 %v615, 120
    %v643 = vpop.permute.xlu0 %642
    %644 = vrot.lane.b32.xlu0 %v617, 120
    %v645 = vpop.permute.xlu0 %644
    %646 = vrot.lane.b32.xlu0 %v619, 120
    %v647 = vpop.permute.xlu0 %646
    %648 = vrot.lane.b32.xlu0 %v621, 120
    %v649 = vpop.permute.xlu0 %648
    %v654 = vsel %vm420, %v599, %v627
    %v655 = vsel %vm420, %v601, %v629
    %v656 = vsel %vm420, %v603, %v631
    %v657 = vsel %vm420, %v605, %v633
    %vm658 = vcmask 982016
    %v659 = vsel %vm658, %v654, %v643
    %v660 = vsel %vm658, %v655, %v645
    %v661 = vsel %vm658, %v656, %v647
    %v662 = vsel %vm658, %v657, %v649
    %v663 = vld [vmem:[%s5] sm:$0xff]
    %v664 = vld [vmem:[%s5 + $0x8] sm:$0xff]
    %v665 = vld [vmem:[%s5 + $0x10] sm:$0xff]
    %v666 = vld [vmem:[%s5 + $0x18] sm:$0xff]
    %v667 = vld [vmem:[%s5 + $0x20] sm:$0xff]
    %v668 = vld [vmem:[%s5 + $0x28] sm:$0xff]
    %v669 = vld [vmem:[%s5 + $0x30] sm:$0xff]
    %v670 = vld [vmem:[%s5 + $0x38] sm:$0xff]
    %v671 = vld [vmem:[%s5 + $0x40] sm:$0xff]
    %v672 = vld [vmem:[%s5 + $0x48] sm:$0xff]
    %v673 = vld [vmem:[%s5 + $0x50] sm:$0xff]
    %v674 = vld [vmem:[%s5 + $0x58] sm:$0xff]
    %v675 = vld [vmem:[%s5 + $0x60] sm:$0xff]
    %v676 = vld [vmem:[%s5 + $0x68] sm:$0xff]
    %v677 = vld [vmem:[%s5 + $0x70] sm:$0xff]
    %v678 = vld [vmem:[%s5 + $0x78] sm:$0xff]
    %v679 = vld [vmem:[%s5 + $0x80] sm:$0xff]
    %v680 = vld [vmem:[%s5 + $0x88] sm:$0xff]
    %v681 = vld [vmem:[%s5 + $0x90] sm:$0xff]
    %v682 = vld [vmem:[%s5 + $0x98] sm:$0xff]
    %v683 = vld [vmem:[%s5 + $0xa0] sm:$0xff]
    %v684 = vld [vmem:[%s5 + $0xa8] sm:$0xff]
    %v685 = vld [vmem:[%s5 + $0xb0] sm:$0xf]
    %v686 = vld [vmem:[%s6] sm:$0x1]
    %v688 = vlaneseq
    %v689 = vshrl.u32 %v688, 7
    %v690 = vsub.s32 0, %v689
    %v691 = vrot.slane %v686, %v690
    %vm693 = vcmask 424960
    %v694 = vsel %vm693, %v643, 0
    %v696 = vsel %vm693, %v645, 0
    %v698 = vsel %vm693, %v647, 0
    %v700 = vsel %vm693, %v649, 0
    %vm702 = vcmask 1043456
    %v704 = vsel %vm702, %v685, 0
    %706 = vmatprep.subr.mxu0 0.0
    %707 = vmatpush1.msra.mxu0 %v663
    %708 = vmatprep.subr.mxu0 0.0
    %709 = vmatpush1.msra.mxu0 %v664
    %710 = vmatprep.subr.mxu0 0.0
    %711 = vmatpush1.msra.mxu0 %v665
    %712 = vmatprep.subr.mxu0 0.0
    %713 = vmatpush1.msra.mxu0 %v666
    %714 = vmatprep.subr.mxu0 0.0
    %715 = vmatpush1.msra.mxu0 %v667
    %716 = vmatprep.subr.mxu0 0.0
    %717 = vmatpush1.msra.mxu0 %v668
    %718 = vmatprep.subr.mxu0 0.0
    %719 = vmatpush1.msra.mxu0 %v669
    %720 = vmatprep.subr.mxu0 0.0
    %721 = vmatpush1.msra.mxu0 %v670
    %722 = vmatprep.subr.mxu0 0.0
    %723 = vmatpush1.msra.mxu0 %v671
    %724 = vmatprep.subr.mxu0 0.0
    %725 = vmatpush1.msra.mxu0 %v672
    %726 = vmatprep.subr.mxu0 0.0
    %727 = vmatpush1.msra.mxu0 %v673
    %728 = vmatprep.subr.mxu0 0.0
    %729 = vmatpush1.msra.mxu0 %v674
    %730 = vmatprep.subr.mxu0 0.0
    %731 = vmatpush1.msra.mxu0 %v675
    %732 = vmatprep.subr.mxu0 0.0
    %733 = vmatpush1.msra.mxu0 %v676
    %734 = vmatprep.subr.mxu0 0.0
    %735 = vmatpush1.msra.mxu0 %v677
    %736 = vmatprep.subr.mxu0 0.0
    %737 = vmatpush1.msra.mxu0 %v678
    %738 = vmatprep.subr.mxu0 0.0
    %739 = vmatpush1.msra.mxu0 %v679
    %740 = vmatprep.subr.mxu0 0.0
    %741 = vmatpush1.msra.mxu0 %v680
    %742 = vmatprep.subr.mxu0 0.0
    %743 = vmatpush1.msra.mxu0 %v681
    %744 = vmatprep.subr.mxu0 0.0
    %745 = vmatpush1.msra.mxu0 %v682
    %746 = vmatprep.subr.mxu0 0.0
    %747 = vmatpush1.msra.mxu0 %v683
    %748 = vmatprep.subr.mxu0 0.0
    %749 = vmatpush1.msra.mxu0 %v684
    %750 = vmatprep.subr.mxu0 0.0
    %751 = vmatpush1.msra.mxu0 %v704
    %752 = vmatprep.subr.mxu0 0.0
    %753 = vmatpush1.msra.mxu0 0.0
    %754 = vmatprep.subr.mxu0 0.0
    %755 = vmatpush1.msra.mxu0 0.0
    %756 = vmatprep.subr.mxu0 0.0
    %757 = vmatpush1.msra.mxu0 0.0
    %758 = vmatprep.subr.mxu0 0.0
    %759 = vmatpush1.msra.mxu0 0.0
    %760 = vmatprep.subr.mxu0 0.0
    %761 = vmatpush1.msra.mxu0 0.0
    %762 = vmatprep.subr.mxu0 0.0
    %763 = vmatpush1.msra.mxu0 0.0
    %764 = vmatprep.subr.mxu0 0.0
    %765 = vmatpush1.msra.mxu0 0.0
    %766 = vmatprep.subr.mxu0 0.0
    %767 = vmatpush1.msra.mxu0 0.0
    %768 = vmatprep.subr.mxu0 0.0
    %769 = vmatpush1.msra.mxu0 0.0
    %770 = vmatprep.mubr.f32.mxu0 %v694
    %771 = vmatmul.mubr.f32.gmra.mrb[0].mxu0 %v659
    %v772 = vpop.f32.mrb[0].mxu0
    %v773 = vadd.f32 %v691, %v772
    %v774 = vpop.f32.mrb[0].mxu0
    %775 = vmatprep.mubr.f32.mxu0 %v696
    %776 = vmatmul.mubr.f32.gmra.mrb[0].mxu0 %v660
    %v777 = vpop.f32.mrb[0].mxu0
    %v778 = vadd.f32 %v691, %v777
    %v779 = vpop.f32.mrb[0].mxu0
    %780 = vmatprep.mubr.f32.mxu0 %v698
    %781 = vmatmul.mubr.f32.gmra.mrb[0].mxu0 %v661
    %v782 = vpop.f32.mrb[0].mxu0
    %v783 = vadd.f32 %v691, %v782
    %v784 = vpop.f32.mrb[0].mxu0
    %785 = vmatprep.mubr.f32.mxu0 %v700
    %786 = vmatmul.mubr.f32.gmra.mrb[0].mxu0 %v662
    %v787 = vpop.f32.mrb[0].mxu0
    %v788 = vadd.f32 %v691, %v787
    %v789 = vpop.f32.mrb[0].mxu0
    %790 = vdwg.mxu0
    %v791 = vmax.f32 %v773, 0.0
    %v792 = vmax.f32 %v778, 0.0
    %v793 = vmax.f32 %v783, 0.0
    %v794 = vmax.f32 %v788, 0.0
    %v795 = vlaneseq
    %v796 = vshrl.u32 %v795, 7
    %v797 = vadd.s32 %v796, 8
    %v798 = vadd.s32 %v796, 16
    %v799 = vadd.s32 %v796, 24
    %vm800 = vcmp.lt.s32.totalorder %v796, 0
    %v801 = vsub.s32 0, %v796
    %v802 = vsel %vm800, %v801, %v796
    %v803 = vshrl.u32 %v802, 4
    %v804 = vand.u32 %v802, 15
    %v805 = vsub.s32 0, %v804
    %v806 = vsel %vm800, %v805, %v804
    %vm807 = vcmp.lt.s32.totalorder %v797, 0
    %v808 = vsub.s32 0, %v797
    %v809 = vsel %vm807, %v808, %v797
    %v810 = vshrl.u32 %v809, 4
    %v811 = vand.u32 %v809, 15
    %v812 = vsub.s32 0, %v811
    %v813 = vsel %vm807, %v812, %v811
    %vm814 = vcmp.lt.s32.totalorder %v798, 0
    %v815 = vsub.s32 0, %v798
    %v816 = vsel %vm814, %v815, %v798
    %v817 = vshrl.u32 %v816, 4
    %v818 = vand.u32 %v816, 15
    %v819 = vsub.s32 0, %v818
    %v820 = vsel %vm814, %v819, %v818
    %vm821 = vcmp.lt.s32.totalorder %v799, 0
    %v822 = vsub.s32 0, %v799
    %v823 = vsel %vm821, %v822, %v799
    %v824 = vshrl.u32 %v823, 4
    %v825 = vand.u32 %v823, 15
    %v826 = vsub.s32 0, %v825
    %v827 = vsel %vm821, %v826, %v825
    %vm828 = vcmp.ne.s32.totalorder %v806, 0
    %vm829 = vcmp.ne.s32.totalorder %v813, 0
    %vm830 = vcmp.ne.s32.totalorder %v820, 0
    %vm831 = vcmp.ne.s32.totalorder %v827, 0
    %vm832 = vcmp.lt.s32.totalorder %v806, 0
    %vm833 = vcmp.lt.s32.totalorder %v813, 0
    %vm834 = vcmp.lt.s32.totalorder %v820, 0
    %vm835 = vcmp.lt.s32.totalorder %v827, 0
    %vm836 = vmand %vm832, %vm828
    %vm837 = vmand %vm833, %vm829
    %vm838 = vmand %vm834, %vm830
    %vm839 = vmand %vm835, %vm831
    %v840 = vadd.s32 %v806, 16
    %v841 = vadd.s32 %v813, 16
    %v842 = vadd.s32 %v820, 16
    %v843 = vadd.s32 %v827, 16
    %v844 = vsel %vm836, %v840, %v806
    %v845 = vsel %vm837, %v841, %v813
    %v846 = vsel %vm838, %v842, %v820
    %v847 = vsel %vm839, %v843, %v827
    %vm848 = vcmp.lt.s32.totalorder %v844, 11
    %vm849 = vcmp.lt.s32.totalorder %v845, 11
    %vm850 = vcmp.lt.s32.totalorder %v846, 11
    %vm851 = vcmp.lt.s32.totalorder %v847, 11
    %v852 = vsel %vm848, 1, 0
    %v853 = vsel %vm849, 1, 0
    %v854 = vsel %vm850, 1, 0
    %v855 = vsel %vm851, 1, 0
    %vm856 = vcmp.eq.s32.totalorder %v852, 1
    %vm857 = vcmp.eq.s32.totalorder %v853, 1
    %vm858 = vcmp.eq.s32.totalorder %v854, 1
    %vm859 = vcmp.eq.s32.totalorder %v855, 1
    %v860 = vsel %vm856, %v791, 0.0
    %v861 = vsel %vm857, %v792, 0.0
    %v862 = vsel %vm858, %v793, 0.0
    %v863 = vsel %vm859, %v794, 0.0
    %864 = vst.msk [vmem:[#allocation4] sm:$0xff] %vm448, %v860
    %865 = vst.msk [vmem:[#allocation4 + $0x8] sm:$0xff] %vm448, %v861
    %866 = vst.msk [vmem:[#allocation4 + $0x10] sm:$0xff] %vm448, %v862
    %867 = vst.msk [vmem:[#allocation4 + $0x18] sm:$0xff] %vm448, %v863
    %v868 = vld [vmem:[#allocation4] ss:$2 sm:$0xff]
    %s869 = scalar_lea.vmem [#allocation4], 16
    %v870 = vld [vmem:[%s869] ss:$2 sm:$0xff]
    %s871 = scalar_lea.vmem [#allocation4], 1
    %v872 = vld [vmem:[%s871] ss:$2 sm:$0xff]
    %s873 = scalar_lea.vmem [#allocation4], 17
    %v874 = vld [vmem:[%s873] ss:$2 sm:$0xff]
    %v875 = vmax.f32 %v868, %v872
    %v876 = vmax.f32 %v870, %v874
    %877 = vst.msk [vmem:[#allocation5] sm:$0xff] %vm448, %v875
    %878 = vst.msk [vmem:[#allocation5 + $0x8] sm:$0xff] %vm448, %v876
    %v879 = vld [vmem:[#allocation5] ss:$2 sm:$0xff]
    %s880 = scalar_lea.vmem [#allocation5], 1
    %v881 = vld [vmem:[%s880] ss:$2 sm:$0xff]
    %v882 = vmax.f32 %v879, %v881
    %883 = vst.msk [vmem:[#allocation6] sm:$0xff] %vm448, %v882
    %v884 = vld [vmem:[#allocation6] ss:$2 sm:$0xf]
    %s885 = scalar_lea.vmem [#allocation6], 1
    %v886 = vld [vmem:[%s885] ss:$2 sm:$0xf]
    %v887 = vmax.f32 %v884, %v886
    %vm888 = vcmask 732160
    %889 = vst.msk [vmem:[#allocation7] sm:$0xf] %vm888, %v887
    %v890 = vld [vmem:[#allocation7] ss:$2 sm:$0x3]
    %s891 = scalar_lea.vmem [#allocation7], 1
    %v892 = vld [vmem:[%s891] ss:$2 sm:$0x3]
    %v893 = vmax.f32 %v890, %v892
    %v894 = vld [vmem:[%s7] sm:$0xff]
    %v895 = vld [vmem:[%s7 + $0x8] sm:$0xff]
    %v896 = vld [vmem:[%s7 + $0x10] sm:$0xff]
    %v897 = vld [vmem:[%s7 + $0x18] sm:$0xff]
    %v898 = vld [vmem:[%s7 + $0x20] sm:$0xff]
    %v899 = vld [vmem:[%s7 + $0x28] sm:$0xff]
    %v900 = vld [vmem:[%s7 + $0x30] sm:$0xff]
    %v901 = vld [vmem:[%s7 + $0x38] sm:$0xff]
    %v902 = vld [vmem:[%s7 + $0x40] sm:$0xff]
    %v903 = vld [vmem:[%s7 + $0x48] sm:$0xff]
    %v904 = vld [vmem:[%s7 + $0x50] sm:$0xff]
    %v905 = vld [vmem:[%s7 + $0x58] sm:$0x3]
    %v906 = vld [vmem:[%s8] sm:$0x1]
    %v908 = vlaneseq
    %v909 = vshrl.u32 %v908, 7
    %v910 = vsub.s32 0, %v909
    %v911 = vrot.slane %v906, %v910
    %v914 = vsel %vm448, %v893, 0
    %v917 = vsel %vm473, %v905, 0
    %919 = vmatprep.subr.mxu0 0.0
    %920 = vmatpush1.msra.mxu0 %v894
    %921 = vmatprep.subr.mxu0 0.0
    %922 = vmatpush1.msra.mxu0 %v895
    %923 = vmatprep.subr.mxu0 0.0
    %924 = vmatpush1.msra.mxu0 %v896
    %925 = vmatprep.subr.mxu0 0.0
    %926 = vmatpush1.msra.mxu0 %v897
    %927 = vmatprep.subr.mxu0 0.0
    %928 = vmatpush1.msra.mxu0 %v898
    %929 = vmatprep.subr.mxu0 0.0
    %930 = vmatpush1.msra.mxu0 %v899
    %931 = vmatprep.subr.mxu0 0.0
    %932 = vmatpush1.msra.mxu0 %v900
    %933 = vmatprep.subr.mxu0 0.0
    %934 = vmatpush1.msra.mxu0 %v901
    %935 = vmatprep.subr.mxu0 0.0
    %936 = vmatpush1.msra.mxu0 %v902
    %937 = vmatprep.subr.mxu0 0.0
    %938 = vmatpush1.msra.mxu0 %v903
    %939 = vmatprep.subr.mxu0 0.0
    %940 = vmatpush1.msra.mxu0 %v904
    %941 = vmatprep.subr.mxu0 0.0
    %942 = vmatpush1.msra.mxu0 %v917
    %943 = vmatprep.subr.mxu0 0.0
    %944 = vmatpush1.msra.mxu0 0.0
    %945 = vmatprep.subr.mxu0 0.0
    %946 = vmatpush1.msra.mxu0 0.0
    %947 = vmatprep.subr.mxu0 0.0
    %948 = vmatpush1.msra.mxu0 0.0
    %949 = vmatprep.subr.mxu0 0.0
    %950 = vmatpush1.msra.mxu0 0.0
    %951 = vmatprep.subr.mxu0 0.0
    %952 = vmatpush1.msra.mxu0 0.0
    %953 = vmatprep.subr.mxu0 0.0
    %954 = vmatpush1.msra.mxu0 0.0
    %955 = vmatprep.subr.mxu0 0.0
    %956 = vmatpush1.msra.mxu0 0.0
    %957 = vmatprep.subr.mxu0 0.0
    %958 = vmatpush1.msra.mxu0 0.0
    %959 = vmatprep.subr.mxu0 0.0
    %960 = vmatpush1.msra.mxu0 0.0
    %961 = vmatprep.subr.mxu0 0.0
    %962 = vmatpush1.msra.mxu0 0.0
    %963 = vmatprep.subr.mxu0 0.0
    %964 = vmatpush1.msra.mxu0 0.0
    %965 = vmatprep.subr.mxu0 0.0
    %966 = vmatpush1.msra.mxu0 0.0
    %967 = vmatprep.subr.mxu0 0.0
    %968 = vmatpush1.msra.mxu0 0.0
    %969 = vmatprep.subr.mxu0 0.0
    %970 = vmatpush1.msra.mxu0 0.0
    %971 = vmatprep.subr.mxu0 0.0
    %972 = vmatpush1.msra.mxu0 0.0
    %973 = vmatprep.subr.mxu0 0.0
    %974 = vmatpush1.msra.mxu0 0.0
    %975 = vmatprep.subr.mxu0 0.0
    %976 = vmatpush1.msra.mxu0 0.0
    %977 = vmatprep.subr.mxu0 0.0
    %978 = vmatpush1.msra.mxu0 0.0
    %979 = vmatprep.subr.mxu0 0.0
    %980 = vmatpush1.msra.mxu0 0.0
    %981 = vmatprep.subr.mxu0 0.0
    %982 = vmatpush1.msra.mxu0 0.0
    %983 = vmatprep.mubr.f32.mxu0 0.0
    %984 = vmatmul.mubr.f32.gmra.mrb[0].mxu0 %v914
    %v985 = vpop.f32.mrb[0].mxu0
    %v986 = vadd.f32 %v911, %v985
    %v987 = vpop.f32.mrb[0].mxu0
    %988 = vdwg.mxu0
    %v989 = vmax.f32 %v986, 0.0
    %v990 = vld [vmem:[%s9] sm:$0x1]
    %v991 = vld [vmem:[#allocation8] sm:$0x1]
    %993 = vset.pattern.permute.xlu0 0
    %994 = vperm.xlu0 %993, %v991
    %v995 = vpop.permute.xlu0 %994
    %v997 = vlaneseq
    %v998 = vshrl.u32 %v997, 7
    %v999 = vsub.s32 0, %v998
    %v1000 = vrot.slane %v995, %v999
    %v1002 = vsel %vm283, %v990, 0
    %v1005 = vsel %vm283, %v989, 0
    %1007 = vmatprep.subr.mxu0 0.0
    %1008 = vmatpush1.xpose.msra.mxu0 %v1005
    %1009 = vmatprep.subr.mxu0 0.0
    %1010 = vmatpush1.xpose.msra.mxu0 0.0
    %1011 = vmatprep.subr.mxu0 0.0
    %1012 = vmatpush1.xpose.msra.mxu0 0.0
    %1013 = vmatprep.subr.mxu0 0.0
    %1014 = vmatpush1.xpose.msra.mxu0 0.0
    %1015 = vmatprep.subr.mxu0 0.0
    %1016 = vmatpush1.xpose.msra.mxu0 0.0
    %1017 = vmatprep.subr.mxu0 0.0
    %1018 = vmatpush1.xpose.msra.mxu0 0.0
    %1019 = vmatprep.subr.mxu0 0.0
    %1020 = vmatpush1.xpose.msra.mxu0 0.0
    %1021 = vmatprep.subr.mxu0 0.0
    %1022 = vmatpush1.xpose.msra.mxu0 0.0
    %1023 = vmatprep.subr.mxu0 0.0
    %1024 = vmatpush1.xpose.msra.mxu0 0.0
    %1025 = vmatprep.subr.mxu0 0.0
    %1026 = vmatpush1.xpose.msra.mxu0 0.0
    %1027 = vmatprep.subr.mxu0 0.0
    %1028 = vmatpush1.xpose.msra.mxu0 0.0
    %1029 = vmatprep.subr.mxu0 0.0
    %1030 = vmatpush1.xpose.msra.mxu0 0.0
    %1031 = vmatprep.subr.mxu0 0.0
    %1032 = vmatpush1.xpose.msra.mxu0 0.0
    %1033 = vmatprep.subr.mxu0 0.0
    %1034 = vmatpush1.xpose.msra.mxu0 0.0
    %1035 = vmatprep.subr.mxu0 0.0
    %1036 = vmatpush1.xpose.msra.mxu0 0.0
    %1037 = vmatprep.subr.mxu0 0.0
    %1038 = vmatpush1.xpose.msra.mxu0 0.0
    %1039 = vmatprep.subr.mxu0 0.0
    %1040 = vmatpush1.xpose.msra.mxu0 0.0
    %1041 = vmatprep.subr.mxu0 0.0
    %1042 = vmatpush1.xpose.msra.mxu0 0.0
    %1043 = vmatprep.subr.mxu0 0.0
    %1044 = vmatpush1.xpose.msra.mxu0 0.0
    %1045 = vmatprep.subr.mxu0 0.0
    %1046 = vmatpush1.xpose.msra.mxu0 0.0
    %1047 = vmatprep.subr.mxu0 0.0
    %1048 = vmatpush1.xpose.msra.mxu0 0.0
    %1049 = vmatprep.subr.mxu0 0.0
    %1050 = vmatpush1.xpose.msra.mxu0 0.0
    %1051 = vmatprep.subr.mxu0 0.0
    %1052 = vmatpush1.xpose.msra.mxu0 0.0
    %1053 = vmatprep.subr.mxu0 0.0
    %1054 = vmatpush1.xpose.msra.mxu0 0.0
    %1055 = vmatprep.subr.mxu0 0.0
    %1056 = vmatpush1.xpose.msra.mxu0 0.0
    %1057 = vmatprep.subr.mxu0 0.0
    %1058 = vmatpush1.xpose.msra.mxu0 0.0
    %1059 = vmatprep.subr.mxu0 0.0
    %1060 = vmatpush1.xpose.msra.mxu0 0.0
    %1061 = vmatprep.subr.mxu0 0.0
    %1062 = vmatpush1.xpose.msra.mxu0 0.0
    %1063 = vmatprep.subr.mxu0 0.0
    %1064 = vmatpush1.xpose.msra.mxu0 0.0
    %1065 = vmatprep.subr.mxu0 0.0
    %1066 = vmatpush1.xpose.msra.mxu0 0.0
    %1067 = vmatprep.subr.mxu0 0.0
    %1068 = vmatpush1.xpose.msra.mxu0 0.0
    %1069 = vmatprep.subr.mxu0 0.0
    %1070 = vmatpush1.xpose.msra.mxu0 0.0
    %1071 = vmatprep.mubr.f32.mxu0 0.0
    %1072 = vmatmul.mubr.f32.gmra.mrb[0].mxu0 %v1002
    %v1073 = vpop.f32.mrb[0].mxu0
    %v1074 = vadd.f32 %v1000, %v1073
    %v1075 = vpop.f32.mrb[0].mxu0
    %1076 = vdwg.mxu0
    %vm1077 = vcmask 8192
    %1078 = vst.msk [vmem:[#allocation9] sm:$0x1] %vm1077, %v1074
    // Predicated region
    $region46: #{all_conv_forward.1} parent=1 // pred_check
      _
    $region47: #{all_conv_forward.1} parent=1 // pred_check_branch
      %1080 = sbr.rel (0) target = $region49
    $region48: #{all_conv_forward.1} parent=1 // pred_region
      %s1082 = ssub.s32 16, 16
      %1083 = vsyncadd [#allocation10], %s1082
      %s1085 = sshll.u32 [#allocation9], 4
      %s1086 = int_to_ptr.vmem [resolvable:$true] %s1085
      %1088 = dma.vmem_to_hbm [thread:$0]  %s1086, 16, %s11, [#allocation10]
    $region49: #{all_conv_forward.1} parent=1 // pred_fallthru
      _
    // Predicated region
    $region50: #{all_conv_forward.1} parent=1 // pred_check
      _
    $region51: #{all_conv_forward.1} parent=1 // pred_check_branch
      %1090 = sbr.rel (0) target = $region53
    $region52: #{all_conv_forward.1} parent=1 // pred_region
      %1091 = dma.done [#allocation10], 16
    $region53: #{all_conv_forward.1} parent=1 // pred_fallthru
      _
    %1092 = vsyncpa [#allocation10], 1

</llo_original>
